<compile_context>
chip_gen: v7x
topology: tpu7x:2x2x1
jax: 0.10.0
libtpu: 0.0.40
codegen_flags: <defaults>
</compile_context>

<pallas_src>
import functools

import jax
import jax.numpy as jnp
from jax.experimental import pallas as pl
from jax.experimental.pallas import tpu as pltpu


def _double_conv_kernel(masks_ref, w1_ref, b1_ref, w2_ref, b2_ref,
                        x_ref, o_ref, *, H, W):
    """One batch element, fully fused: conv3x3+BN+ReLU -> conv3x3+BN+ReLU.

    masks_ref : (9, H*W)            f32  boundary masks, one row per tap.
    w1_ref    : (9, C_mid_p, C_in_p) f32  per-tap BN-folded weight matrices.
    b1_ref    : (C_mid_p, 1)         f32  BN-folded bias.
    w2_ref    : (9, C_out, C_mid_p)  f32
    b2_ref    : (C_out, 1)           f32
    x_ref     : (C_in_p, H*W)        activation block (channel-padded).
    o_ref     : (C_out,  H*W)        output block (lane-dense stores).
    """
    f32 = jnp.float32
    HW = H * W

    def conv3x3_bn_relu(inp, w_ref, b_ref):
        n_out = w_ref.shape[1]
        # Accumulator starts at the (BN-folded) bias, broadcast over lanes.
        acc = jnp.broadcast_to(b_ref[...], (n_out, HW)).astype(f32)
        t = 0
        for dh in (-1, 0, 1):
            for dw in (-1, 0, 1):
                s = dh * W + dw
                if s == 0:
                    tap = inp                          # center tap: no shift
                else:
                    # Shift whole slab on the XLU, then zero wrapped pixels.
                    tap = pltpu.roll(inp, (-s) % HW, axis=1)
                    tap = tap * masks_ref[t:t + 1, :]
                # Channel contraction on the MXU, f32 accumulation.
                acc = acc + jnp.dot(w_ref[t], tap,
                                    preferred_element_type=f32)
                t += 1
        return jnp.maximum(acc, 0.0)

    x = x_ref[...].astype(f32)                         # (C_in_p, HW)
    mid = conv3x3_bn_relu(x, w1_ref, b1_ref)           # (C_mid_p, HW), in regs
    out = conv3x3_bn_relu(mid, w2_ref, b2_ref)         # (C_out,  HW)
    o_ref[...] = out.astype(o_ref.dtype)


def double_conv(x, w1, b1, g1, beta1, m1, v1, w2, b2, g2, beta2, m2, v2,
                *, eps=1e-5):
    """DoubleConv forward (inference): x is NCHW, weights in PyTorch layouts.

    w1: (C_mid, C_in, 3, 3),  w2: (C_out, C_mid, 3, 3)
    b*, g*, beta*, m*, v*: per-channel conv bias / BN gamma / beta / mean / var
    """
    N, C_in, H, W = x.shape
    C_mid = w1.shape[0]
    C_out = w2.shape[0]
    HW = H * W

    # ---- Fold BatchNorm (eval mode) into the conv weights & biases ----
    s1 = g1 / jnp.sqrt(v1 + eps)
    w1_eff = (w1 * s1[:, None, None, None]).astype(jnp.float32)
    b1_eff = (s1 * (b1 - m1) + beta1).astype(jnp.float32)
    s2 = g2 / jnp.sqrt(v2 + eps)
    w2_eff = (w2 * s2[:, None, None, None]).astype(jnp.float32)
    b2_eff = (s2 * (b2 - m2) + beta2).astype(jnp.float32)

    # ---- Sublane-align the contraction (K) channel dims with zero padding ----
    rup = lambda c: -(-c // 8) * 8
    C_in_p, C_mid_p = rup(C_in), rup(C_mid)

    # Activations: NCHW -> (N, C, H*W) (pure reshape, no transpose), padded C.
    x_flat = x.reshape(N, C_in, HW)
    if C_in_p != C_in:
        x_flat = jnp.pad(x_flat, ((0, 0), (0, C_in_p - C_in), (0, 0)))

    # Per-tap weight matrices (tap-major) and biases, zero-padded.
    w1_p = jnp.transpose(w1_eff, (2, 3, 0, 1)).reshape(9, C_mid, C_in)
    w1_p = jnp.pad(w1_p, ((0, 0), (0, C_mid_p - C_mid), (0, C_in_p - C_in)))
    b1_p = jnp.pad(b1_eff, (0, C_mid_p - C_mid)).reshape(C_mid_p, 1)
    w2_p = jnp.transpose(w2_eff, (2, 3, 0, 1)).reshape(9, C_out, C_mid)
    w2_p = jnp.pad(w2_p, ((0, 0), (0, 0), (0, C_mid_p - C_mid)))
    b2_p = b2_eff.reshape(C_out, 1)

    # Boundary masks: row t is 1 where tap offset t reads a valid pixel.
    hh = jnp.arange(H)[:, None]
    ww = jnp.arange(W)[None, :]
    rows = []
    for dh in (-1, 0, 1):
        for dw in (-1, 0, 1):
            valid = ((hh + dh >= 0) & (hh + dh < H) &
                     (ww + dw >= 0) & (ww + dw < W))
            rows.append(valid.reshape(HW))
    masks = jnp.stack(rows, axis=0).astype(jnp.float32)      # (9, HW)

    kernel = functools.partial(_double_conv_kernel, H=H, W=W)

    out_flat = pl.pallas_call(
        kernel,
        out_shape=jax.ShapeDtypeStruct((N, C_out, HW), x.dtype),
        grid_spec=pltpu.PrefetchScalarGridSpec(
            num_scalar_prefetch=0,
            grid=(N,),                       # one image per step; parallel axis
            in_specs=[
                pl.BlockSpec((9, HW), lambda n: (0, 0)),               # masks
                pl.BlockSpec((9, C_mid_p, C_in_p), lambda n: (0, 0, 0)),  # w1
                pl.BlockSpec((C_mid_p, 1), lambda n: (0, 0)),          # b1
                pl.BlockSpec((9, C_out, C_mid_p), lambda n: (0, 0, 0)),   # w2
                pl.BlockSpec((C_out, 1), lambda n: (0, 0)),            # b2
                pl.BlockSpec((None, C_in_p, HW), lambda n: (n, 0, 0)),  # x
            ],
            out_specs=pl.BlockSpec((None, C_out, HW), lambda n: (n, 0, 0)),
        ),
        compiler_params=pltpu.CompilerParams(
            dimension_semantics=("parallel",)),
    )(masks, w1_p, b1_p, w2_p, b2_p, x_flat)

    return out_flat.reshape(N, C_out, H, W)


def _ref_double_conv(x, w1, b1, g1, beta1, m1, v1,
                     w2, b2, g2, beta2, m2, v2, eps=1e-5):
    """Plain-JAX reference: (conv -> BN(eval) -> ReLU) x 2, NCHW."""
    def conv_bn_relu(inp, w, b, g, be, m, v):
        y = jax.lax.conv_general_dilated(
            inp, w, window_strides=(1, 1), padding=((1, 1), (1, 1)),
            dimension_numbers=("NCHW", "OIHW", "NCHW"),
            precision=jax.lax.Precision.HIGHEST)
        y = y + b.reshape(1, -1, 1, 1)
        y = (g.reshape(1, -1, 1, 1) * (y - m.reshape(1, -1, 1, 1))
             / jnp.sqrt(v.reshape(1, -1, 1, 1) + eps)) + be.reshape(1, -1, 1, 1)
        return jnp.maximum(y, 0.0)

    h = conv_bn_relu(x, w1, b1, g1, beta1, m1, v1)
    return conv_bn_relu(h, w2, b2, g2, beta2, m2, v2)


if __name__ == "__main__":
    # DoubleConv(in_channels=4, out_channels=8)  (mid_channels defaults to 8)
    in_channels, out_channels = 4, 8
    mid_channels = out_channels
    N, H, W = 2, 16, 16
    eps = 1e-5

    key = jax.random.PRNGKey(0)
    k = jax.random.split(key, 13)

    x = jax.random.normal(k[0], (N, in_channels, H, W), jnp.float32)

    w1 = jax.random.normal(k[1], (mid_channels, in_channels, 3, 3), jnp.float32) * 0.2
    b1 = jax.random.normal(k[2], (mid_channels,), jnp.float32) * 0.1
    g1 = 1.0 + 0.1 * jax.random.normal(k[3], (mid_channels,), jnp.float32)
    beta1 = 0.1 * jax.random.normal(k[4], (mid_channels,), jnp.float32)
    m1 = 0.1 * jax.random.normal(k[5], (mid_channels,), jnp.float32)
    v1 = jnp.abs(jax.random.normal(k[6], (mid_channels,), jnp.float32)) + 0.5

    w2 = jax.random.normal(k[7], (out_channels, mid_channels, 3, 3), jnp.float32) * 0.2
    b2 = jax.random.normal(k[8], (out_channels,), jnp.float32) * 0.1
    g2 = 1.0 + 0.1 * jax.random.normal(k[9], (out_channels,), jnp.float32)
    beta2 = 0.1 * jax.random.normal(k[10], (out_channels,), jnp.float32)
    m2 = 0.1 * jax.random.normal(k[11], (out_channels,), jnp.float32)
    v2 = jnp.abs(jax.random.normal(k[12], (out_channels,), jnp.float32)) + 0.5

    y = double_conv(x, w1, b1, g1, beta1, m1, v1,
                    w2, b2, g2, beta2, m2, v2, eps=eps)
    y = jax.block_until_ready(y)

    y_ref = _ref_double_conv(x, w1, b1, g1, beta1, m1, v1,
                             w2, b2, g2, beta2, m2, v2, eps=eps)

    assert y.shape == (N, out_channels, H, W)
    max_err = float(jnp.max(jnp.abs(y - y_ref)))
    assert jnp.allclose(y, y_ref, atol=1e-3, rtol=1e-3), max_err

    print("KERNEL_OK")
</pallas_src>

<mosaic_0001>
module attributes {stable_mosaic.version = 11 : i64} {
  func.func @_double_conv_kernel(%arg0: i32, %arg1: memref<9x256xf32, #tpu.memory_space<vmem>>, %arg2: memref<9x8x8xf32, #tpu.memory_space<vmem>>, %arg3: memref<8x1xf32, #tpu.memory_space<vmem>>, %arg4: memref<9x8x8xf32, #tpu.memory_space<vmem>>, %arg5: memref<8x1xf32, #tpu.memory_space<vmem>>, %arg6: memref<1x8x256xf32, #tpu.memory_space<vmem>>, %arg7: memref<1x8x256xf32, #tpu.memory_space<vmem>>) attributes {dimension_semantics = [#tpu.dimension_semantics<parallel>], iteration_bounds = array<i64: 2>, scalar_prefetch = 0 : i64, scratch_operands = 0 : i64, tpu.core_type = #tpu.core_type<tc>, window_params = [{pipeline_mode = #tpu.pipeline_mode<synchronous>, transform_indices = @transform_0, window_bounds = array<i64: 9, 256>}, {pipeline_mode = #tpu.pipeline_mode<synchronous>, transform_indices = @transform_1, window_bounds = array<i64: 9, 8, 8>}, {pipeline_mode = #tpu.pipeline_mode<synchronous>, transform_indices = @transform_2, window_bounds = array<i64: 8, 1>}, {pipeline_mode = #tpu.pipeline_mode<synchronous>, transform_indices = @transform_3, window_bounds = array<i64: 9, 8, 8>}, {pipeline_mode = #tpu.pipeline_mode<synchronous>, transform_indices = @transform_4, window_bounds = array<i64: 8, 1>}, {transform_indices = @transform_5, window_bounds = array<i64: 1, 8, 256>}, {transform_indices = @transform_6, window_bounds = array<i64: 1, 8, 256>}]} {
    %c0 = arith.constant 0 : index
    %c0_0 = arith.constant 0 : index
    %c0_1 = arith.constant 0 : index
    %0 = vector.load %arg6[%c0, %c0_0, %c0_1] : memref<1x8x256xf32, #tpu.memory_space<vmem>>, vector<1x8x256xf32>
    %1 = vector.shape_cast %0 : vector<1x8x256xf32> to vector<8x256xf32>
    %c0_2 = arith.constant 0 : index
    %c0_3 = arith.constant 0 : index
    %2 = vector.load %arg3[%c0_2, %c0_3] : memref<8x1xf32, #tpu.memory_space<vmem>>, vector<8x1xf32>
    %3 = vector.shape_cast %2 : vector<8x1xf32> to vector<8x1xf32>
    %4 = vector.broadcast %3 : vector<8x1xf32> to vector<8x256xf32>
    %c17_i32 = arith.constant 17 : i32
    %5 = tpu.dynamic_rotate %1 by %c17_i32 dim 1 : vector<8x256xf32>, i32 -> vector<8x256xf32>
    %c0_4 = arith.constant 0 : index
    %c0_5 = arith.constant 0 : index
    %6 = vector.load %arg1[%c0_4, %c0_5] : memref<9x256xf32, #tpu.memory_space<vmem>>, vector<1x256xf32>
    %7 = vector.broadcast %6 : vector<1x256xf32> to vector<8x256xf32>
    %8 = arith.mulf %5, %7 : vector<8x256xf32>
    %c0_6 = arith.constant 0 : index
    %c0_7 = arith.constant 0 : index
    %c0_8 = arith.constant 0 : index
    %9 = vector.load %arg2[%c0_6, %c0_7, %c0_8] : memref<9x8x8xf32, #tpu.memory_space<vmem>>, vector<1x8x8xf32>
    %10 = vector.shape_cast %9 : vector<1x8x8xf32> to vector<8x8xf32>
    %cst = arith.constant dense<0.000000e+00> : vector<8x256xf32>
    %11 = tpu.matmul %10, %8, %cst {dimension_numbers = #tpu.dot_dimension_numbers<[1], [0], [0], [1], [0, 0, 1, 1], [], []>} : vector<8x8xf32>, vector<8x256xf32>, vector<8x256xf32> -> vector<8x256xf32>
    %12 = arith.addf %4, %11 : vector<8x256xf32>
    %c16_i32 = arith.constant 16 : i32
    %13 = tpu.dynamic_rotate %1 by %c16_i32 dim 1 : vector<8x256xf32>, i32 -> vector<8x256xf32>
    %c1 = arith.constant 1 : index
    %c0_9 = arith.constant 0 : index
    %14 = vector.load %arg1[%c1, %c0_9] : memref<9x256xf32, #tpu.memory_space<vmem>>, vector<1x256xf32>
    %15 = vector.broadcast %14 : vector<1x256xf32> to vector<8x256xf32>
    %16 = arith.mulf %13, %15 : vector<8x256xf32>
    %c1_10 = arith.constant 1 : index
    %c0_11 = arith.constant 0 : index
    %c0_12 = arith.constant 0 : index
    %17 = vector.load %arg2[%c1_10, %c0_11, %c0_12] : memref<9x8x8xf32, #tpu.memory_space<vmem>>, vector<1x8x8xf32>
    %18 = vector.shape_cast %17 : vector<1x8x8xf32> to vector<8x8xf32>
    %cst_13 = arith.constant dense<0.000000e+00> : vector<8x256xf32>
    %19 = tpu.matmul %18, %16, %cst_13 {dimension_numbers = #tpu.dot_dimension_numbers<[1], [0], [0], [1], [0, 0, 1, 1], [], []>} : vector<8x8xf32>, vector<8x256xf32>, vector<8x256xf32> -> vector<8x256xf32>
    %20 = arith.addf %12, %19 : vector<8x256xf32>
    %c15_i32 = arith.constant 15 : i32
    %21 = tpu.dynamic_rotate %1 by %c15_i32 dim 1 : vector<8x256xf32>, i32 -> vector<8x256xf32>
    %c2 = arith.constant 2 : index
    %c0_14 = arith.constant 0 : index
    %22 = vector.load %arg1[%c2, %c0_14] : memref<9x256xf32, #tpu.memory_space<vmem>>, vector<1x256xf32>
    %23 = vector.broadcast %22 : vector<1x256xf32> to vector<8x256xf32>
    %24 = arith.mulf %21, %23 : vector<8x256xf32>
    %c2_15 = arith.constant 2 : index
    %c0_16 = arith.constant 0 : index
    %c0_17 = arith.constant 0 : index
    %25 = vector.load %arg2[%c2_15, %c0_16, %c0_17] : memref<9x8x8xf32, #tpu.memory_space<vmem>>, vector<1x8x8xf32>
    %26 = vector.shape_cast %25 : vector<1x8x8xf32> to vector<8x8xf32>
    %cst_18 = arith.constant dense<0.000000e+00> : vector<8x256xf32>
    %27 = tpu.matmul %26, %24, %cst_18 {dimension_numbers = #tpu.dot_dimension_numbers<[1], [0], [0], [1], [0, 0, 1, 1], [], []>} : vector<8x8xf32>, vector<8x256xf32>, vector<8x256xf32> -> vector<8x256xf32>
    %28 = arith.addf %20, %27 : vector<8x256xf32>
    %c1_i32 = arith.constant 1 : i32
    %29 = tpu.dynamic_rotate %1 by %c1_i32 dim 1 : vector<8x256xf32>, i32 -> vector<8x256xf32>
    %c3 = arith.constant 3 : index
    %c0_19 = arith.constant 0 : index
    %30 = vector.load %arg1[%c3, %c0_19] : memref<9x256xf32, #tpu.memory_space<vmem>>, vector<1x256xf32>
    %31 = vector.broadcast %30 : vector<1x256xf32> to vector<8x256xf32>
    %32 = arith.mulf %29, %31 : vector<8x256xf32>
    %c3_20 = arith.constant 3 : index
    %c0_21 = arith.constant 0 : index
    %c0_22 = arith.constant 0 : index
    %33 = vector.load %arg2[%c3_20, %c0_21, %c0_22] : memref<9x8x8xf32, #tpu.memory_space<vmem>>, vector<1x8x8xf32>
    %34 = vector.shape_cast %33 : vector<1x8x8xf32> to vector<8x8xf32>
    %cst_23 = arith.constant dense<0.000000e+00> : vector<8x256xf32>
    %35 = tpu.matmul %34, %32, %cst_23 {dimension_numbers = #tpu.dot_dimension_numbers<[1], [0], [0], [1], [0, 0, 1, 1], [], []>} : vector<8x8xf32>, vector<8x256xf32>, vector<8x256xf32> -> vector<8x256xf32>
    %36 = arith.addf %28, %35 : vector<8x256xf32>
    %c4 = arith.constant 4 : index
    %c0_24 = arith.constant 0 : index
    %c0_25 = arith.constant 0 : index
    %37 = vector.load %arg2[%c4, %c0_24, %c0_25] : memref<9x8x8xf32, #tpu.memory_space<vmem>>, vector<1x8x8xf32>
    %38 = vector.shape_cast %37 : vector<1x8x8xf32> to vector<8x8xf32>
    %cst_26 = arith.constant dense<0.000000e+00> : vector<8x256xf32>
    %39 = tpu.matmul %38, %1, %cst_26 {dimension_numbers = #tpu.dot_dimension_numbers<[1], [0], [0], [1], [0, 0, 1, 1], [], []>} : vector<8x8xf32>, vector<8x256xf32>, vector<8x256xf32> -> vector<8x256xf32>
    %40 = arith.addf %36, %39 : vector<8x256xf32>
    %c255_i32 = arith.constant 255 : i32
    %41 = tpu.dynamic_rotate %1 by %c255_i32 dim 1 : vector<8x256xf32>, i32 -> vector<8x256xf32>
    %c5 = arith.constant 5 : index
    %c0_27 = arith.constant 0 : index
    %42 = vector.load %arg1[%c5, %c0_27] : memref<9x256xf32, #tpu.memory_space<vmem>>, vector<1x256xf32>
    %43 = vector.broadcast %42 : vector<1x256xf32> to vector<8x256xf32>
    %44 = arith.mulf %41, %43 : vector<8x256xf32>
    %c5_28 = arith.constant 5 : index
    %c0_29 = arith.constant 0 : index
    %c0_30 = arith.constant 0 : index
    %45 = vector.load %arg2[%c5_28, %c0_29, %c0_30] : memref<9x8x8xf32, #tpu.memory_space<vmem>>, vector<1x8x8xf32>
    %46 = vector.shape_cast %45 : vector<1x8x8xf32> to vector<8x8xf32>
    %cst_31 = arith.constant dense<0.000000e+00> : vector<8x256xf32>
    %47 = tpu.matmul %46, %44, %cst_31 {dimension_numbers = #tpu.dot_dimension_numbers<[1], [0], [0], [1], [0, 0, 1, 1], [], []>} : vector<8x8xf32>, vector<8x256xf32>, vector<8x256xf32> -> vector<8x256xf32>
    %48 = arith.addf %40, %47 : vector<8x256xf32>
    %c241_i32 = arith.constant 241 : i32
    %49 = tpu.dynamic_rotate %1 by %c241_i32 dim 1 : vector<8x256xf32>, i32 -> vector<8x256xf32>
    %c6 = arith.constant 6 : index
    %c0_32 = arith.constant 0 : index
    %50 = vector.load %arg1[%c6, %c0_32] : memref<9x256xf32, #tpu.memory_space<vmem>>, vector<1x256xf32>
    %51 = vector.broadcast %50 : vector<1x256xf32> to vector<8x256xf32>
    %52 = arith.mulf %49, %51 : vector<8x256xf32>
    %c6_33 = arith.constant 6 : index
    %c0_34 = arith.constant 0 : index
    %c0_35 = arith.constant 0 : index
    %53 = vector.load %arg2[%c6_33, %c0_34, %c0_35] : memref<9x8x8xf32, #tpu.memory_space<vmem>>, vector<1x8x8xf32>
    %54 = vector.shape_cast %53 : vector<1x8x8xf32> to vector<8x8xf32>
    %cst_36 = arith.constant dense<0.000000e+00> : vector<8x256xf32>
    %55 = tpu.matmul %54, %52, %cst_36 {dimension_numbers = #tpu.dot_dimension_numbers<[1], [0], [0], [1], [0, 0, 1, 1], [], []>} : vector<8x8xf32>, vector<8x256xf32>, vector<8x256xf32> -> vector<8x256xf32>
    %56 = arith.addf %48, %55 : vector<8x256xf32>
    %c240_i32 = arith.constant 240 : i32
    %57 = tpu.dynamic_rotate %1 by %c240_i32 dim 1 : vector<8x256xf32>, i32 -> vector<8x256xf32>
    %c7 = arith.constant 7 : index
    %c0_37 = arith.constant 0 : index
    %58 = vector.load %arg1[%c7, %c0_37] : memref<9x256xf32, #tpu.memory_space<vmem>>, vector<1x256xf32>
    %59 = vector.broadcast %58 : vector<1x256xf32> to vector<8x256xf32>
    %60 = arith.mulf %57, %59 : vector<8x256xf32>
    %c7_38 = arith.constant 7 : index
    %c0_39 = arith.constant 0 : index
    %c0_40 = arith.constant 0 : index
    %61 = vector.load %arg2[%c7_38, %c0_39, %c0_40] : memref<9x8x8xf32, #tpu.memory_space<vmem>>, vector<1x8x8xf32>
    %62 = vector.shape_cast %61 : vector<1x8x8xf32> to vector<8x8xf32>
    %cst_41 = arith.constant dense<0.000000e+00> : vector<8x256xf32>
    %63 = tpu.matmul %62, %60, %cst_41 {dimension_numbers = #tpu.dot_dimension_numbers<[1], [0], [0], [1], [0, 0, 1, 1], [], []>} : vector<8x8xf32>, vector<8x256xf32>, vector<8x256xf32> -> vector<8x256xf32>
    %64 = arith.addf %56, %63 : vector<8x256xf32>
    %c239_i32 = arith.constant 239 : i32
    %65 = tpu.dynamic_rotate %1 by %c239_i32 dim 1 : vector<8x256xf32>, i32 -> vector<8x256xf32>
    %c8 = arith.constant 8 : index
    %c0_42 = arith.constant 0 : index
    %66 = vector.load %arg1[%c8, %c0_42] : memref<9x256xf32, #tpu.memory_space<vmem>>, vector<1x256xf32>
    %67 = vector.broadcast %66 : vector<1x256xf32> to vector<8x256xf32>
    %68 = arith.mulf %65, %67 : vector<8x256xf32>
    %c8_43 = arith.constant 8 : index
    %c0_44 = arith.constant 0 : index
    %c0_45 = arith.constant 0 : index
    %69 = vector.load %arg2[%c8_43, %c0_44, %c0_45] : memref<9x8x8xf32, #tpu.memory_space<vmem>>, vector<1x8x8xf32>
    %70 = vector.shape_cast %69 : vector<1x8x8xf32> to vector<8x8xf32>
    %cst_46 = arith.constant dense<0.000000e+00> : vector<8x256xf32>
    %71 = tpu.matmul %70, %68, %cst_46 {dimension_numbers = #tpu.dot_dimension_numbers<[1], [0], [0], [1], [0, 0, 1, 1], [], []>} : vector<8x8xf32>, vector<8x256xf32>, vector<8x256xf32> -> vector<8x256xf32>
    %72 = arith.addf %64, %71 : vector<8x256xf32>
    %cst_47 = arith.constant 0.000000e+00 : f32
    %73 = vector.broadcast %cst_47 : f32 to vector<8x256xf32>
    %74 = arith.maximumf %72, %73 : vector<8x256xf32>
    %c0_48 = arith.constant 0 : index
    %c0_49 = arith.constant 0 : index
    %75 = vector.load %arg5[%c0_48, %c0_49] : memref<8x1xf32, #tpu.memory_space<vmem>>, vector<8x1xf32>
    %76 = vector.shape_cast %75 : vector<8x1xf32> to vector<8x1xf32>
    %77 = vector.broadcast %76 : vector<8x1xf32> to vector<8x256xf32>
    %c17_i32_50 = arith.constant 17 : i32
    %78 = tpu.dynamic_rotate %74 by %c17_i32_50 dim 1 : vector<8x256xf32>, i32 -> vector<8x256xf32>
    %c0_51 = arith.constant 0 : index
    %c0_52 = arith.constant 0 : index
    %79 = vector.load %arg1[%c0_51, %c0_52] : memref<9x256xf32, #tpu.memory_space<vmem>>, vector<1x256xf32>
    %80 = vector.broadcast %79 : vector<1x256xf32> to vector<8x256xf32>
    %81 = arith.mulf %78, %80 : vector<8x256xf32>
    %c0_53 = arith.constant 0 : index
    %c0_54 = arith.constant 0 : index
    %c0_55 = arith.constant 0 : index
    %82 = vector.load %arg4[%c0_53, %c0_54, %c0_55] : memref<9x8x8xf32, #tpu.memory_space<vmem>>, vector<1x8x8xf32>
    %83 = vector.shape_cast %82 : vector<1x8x8xf32> to vector<8x8xf32>
    %cst_56 = arith.constant dense<0.000000e+00> : vector<8x256xf32>
    %84 = tpu.matmul %83, %81, %cst_56 {dimension_numbers = #tpu.dot_dimension_numbers<[1], [0], [0], [1], [0, 0, 1, 1], [], []>} : vector<8x8xf32>, vector<8x256xf32>, vector<8x256xf32> -> vector<8x256xf32>
    %85 = arith.addf %77, %84 : vector<8x256xf32>
    %c16_i32_57 = arith.constant 16 : i32
    %86 = tpu.dynamic_rotate %74 by %c16_i32_57 dim 1 : vector<8x256xf32>, i32 -> vector<8x256xf32>
    %c1_58 = arith.constant 1 : index
    %c0_59 = arith.constant 0 : index
    %87 = vector.load %arg1[%c1_58, %c0_59] : memref<9x256xf32, #tpu.memory_space<vmem>>, vector<1x256xf32>
    %88 = vector.broadcast %87 : vector<1x256xf32> to vector<8x256xf32>
    %89 = arith.mulf %86, %88 : vector<8x256xf32>
    %c1_60 = arith.constant 1 : index
    %c0_61 = arith.constant 0 : index
    %c0_62 = arith.constant 0 : index
    %90 = vector.load %arg4[%c1_60, %c0_61, %c0_62] : memref<9x8x8xf32, #tpu.memory_space<vmem>>, vector<1x8x8xf32>
    %91 = vector.shape_cast %90 : vector<1x8x8xf32> to vector<8x8xf32>
    %cst_63 = arith.constant dense<0.000000e+00> : vector<8x256xf32>
    %92 = tpu.matmul %91, %89, %cst_63 {dimension_numbers = #tpu.dot_dimension_numbers<[1], [0], [0], [1], [0, 0, 1, 1], [], []>} : vector<8x8xf32>, vector<8x256xf32>, vector<8x256xf32> -> vector<8x256xf32>
    %93 = arith.addf %85, %92 : vector<8x256xf32>
    %c15_i32_64 = arith.constant 15 : i32
    %94 = tpu.dynamic_rotate %74 by %c15_i32_64 dim 1 : vector<8x256xf32>, i32 -> vector<8x256xf32>
    %c2_65 = arith.constant 2 : index
    %c0_66 = arith.constant 0 : index
    %95 = vector.load %arg1[%c2_65, %c0_66] : memref<9x256xf32, #tpu.memory_space<vmem>>, vector<1x256xf32>
    %96 = vector.broadcast %95 : vector<1x256xf32> to vector<8x256xf32>
    %97 = arith.mulf %94, %96 : vector<8x256xf32>
    %c2_67 = arith.constant 2 : index
    %c0_68 = arith.constant 0 : index
    %c0_69 = arith.constant 0 : index
    %98 = vector.load %arg4[%c2_67, %c0_68, %c0_69] : memref<9x8x8xf32, #tpu.memory_space<vmem>>, vector<1x8x8xf32>
    %99 = vector.shape_cast %98 : vector<1x8x8xf32> to vector<8x8xf32>
    %cst_70 = arith.constant dense<0.000000e+00> : vector<8x256xf32>
    %100 = tpu.matmul %99, %97, %cst_70 {dimension_numbers = #tpu.dot_dimension_numbers<[1], [0], [0], [1], [0, 0, 1, 1], [], []>} : vector<8x8xf32>, vector<8x256xf32>, vector<8x256xf32> -> vector<8x256xf32>
    %101 = arith.addf %93, %100 : vector<8x256xf32>
    %c1_i32_71 = arith.constant 1 : i32
    %102 = tpu.dynamic_rotate %74 by %c1_i32_71 dim 1 : vector<8x256xf32>, i32 -> vector<8x256xf32>
    %c3_72 = arith.constant 3 : index
    %c0_73 = arith.constant 0 : index
    %103 = vector.load %arg1[%c3_72, %c0_73] : memref<9x256xf32, #tpu.memory_space<vmem>>, vector<1x256xf32>
    %104 = vector.broadcast %103 : vector<1x256xf32> to vector<8x256xf32>
    %105 = arith.mulf %102, %104 : vector<8x256xf32>
    %c3_74 = arith.constant 3 : index
    %c0_75 = arith.constant 0 : index
    %c0_76 = arith.constant 0 : index
    %106 = vector.load %arg4[%c3_74, %c0_75, %c0_76] : memref<9x8x8xf32, #tpu.memory_space<vmem>>, vector<1x8x8xf32>
    %107 = vector.shape_cast %106 : vector<1x8x8xf32> to vector<8x8xf32>
    %cst_77 = arith.constant dense<0.000000e+00> : vector<8x256xf32>
    %108 = tpu.matmul %107, %105, %cst_77 {dimension_numbers = #tpu.dot_dimension_numbers<[1], [0], [0], [1], [0, 0, 1, 1], [], []>} : vector<8x8xf32>, vector<8x256xf32>, vector<8x256xf32> -> vector<8x256xf32>
    %109 = arith.addf %101, %108 : vector<8x256xf32>
    %c4_78 = arith.constant 4 : index
    %c0_79 = arith.constant 0 : index
    %c0_80 = arith.constant 0 : index
    %110 = vector.load %arg4[%c4_78, %c0_79, %c0_80] : memref<9x8x8xf32, #tpu.memory_space<vmem>>, vector<1x8x8xf32>
    %111 = vector.shape_cast %110 : vector<1x8x8xf32> to vector<8x8xf32>
    %cst_81 = arith.constant dense<0.000000e+00> : vector<8x256xf32>
    %112 = tpu.matmul %111, %74, %cst_81 {dimension_numbers = #tpu.dot_dimension_numbers<[1], [0], [0], [1], [0, 0, 1, 1], [], []>} : vector<8x8xf32>, vector<8x256xf32>, vector<8x256xf32> -> vector<8x256xf32>
    %113 = arith.addf %109, %112 : vector<8x256xf32>
    %c255_i32_82 = arith.constant 255 : i32
    %114 = tpu.dynamic_rotate %74 by %c255_i32_82 dim 1 : vector<8x256xf32>, i32 -> vector<8x256xf32>
    %c5_83 = arith.constant 5 : index
    %c0_84 = arith.constant 0 : index
    %115 = vector.load %arg1[%c5_83, %c0_84] : memref<9x256xf32, #tpu.memory_space<vmem>>, vector<1x256xf32>
    %116 = vector.broadcast %115 : vector<1x256xf32> to vector<8x256xf32>
    %117 = arith.mulf %114, %116 : vector<8x256xf32>
    %c5_85 = arith.constant 5 : index
    %c0_86 = arith.constant 0 : index
    %c0_87 = arith.constant 0 : index
    %118 = vector.load %arg4[%c5_85, %c0_86, %c0_87] : memref<9x8x8xf32, #tpu.memory_space<vmem>>, vector<1x8x8xf32>
    %119 = vector.shape_cast %118 : vector<1x8x8xf32> to vector<8x8xf32>
    %cst_88 = arith.constant dense<0.000000e+00> : vector<8x256xf32>
    %120 = tpu.matmul %119, %117, %cst_88 {dimension_numbers = #tpu.dot_dimension_numbers<[1], [0], [0], [1], [0, 0, 1, 1], [], []>} : vector<8x8xf32>, vector<8x256xf32>, vector<8x256xf32> -> vector<8x256xf32>
    %121 = arith.addf %113, %120 : vector<8x256xf32>
    %c241_i32_89 = arith.constant 241 : i32
    %122 = tpu.dynamic_rotate %74 by %c241_i32_89 dim 1 : vector<8x256xf32>, i32 -> vector<8x256xf32>
    %c6_90 = arith.constant 6 : index
    %c0_91 = arith.constant 0 : index
    %123 = vector.load %arg1[%c6_90, %c0_91] : memref<9x256xf32, #tpu.memory_space<vmem>>, vector<1x256xf32>
    %124 = vector.broadcast %123 : vector<1x256xf32> to vector<8x256xf32>
    %125 = arith.mulf %122, %124 : vector<8x256xf32>
    %c6_92 = arith.constant 6 : index
    %c0_93 = arith.constant 0 : index
    %c0_94 = arith.constant 0 : index
    %126 = vector.load %arg4[%c6_92, %c0_93, %c0_94] : memref<9x8x8xf32, #tpu.memory_space<vmem>>, vector<1x8x8xf32>
    %127 = vector.shape_cast %126 : vector<1x8x8xf32> to vector<8x8xf32>
    %cst_95 = arith.constant dense<0.000000e+00> : vector<8x256xf32>
    %128 = tpu.matmul %127, %125, %cst_95 {dimension_numbers = #tpu.dot_dimension_numbers<[1], [0], [0], [1], [0, 0, 1, 1], [], []>} : vector<8x8xf32>, vector<8x256xf32>, vector<8x256xf32> -> vector<8x256xf32>
    %129 = arith.addf %121, %128 : vector<8x256xf32>
    %c240_i32_96 = arith.constant 240 : i32
    %130 = tpu.dynamic_rotate %74 by %c240_i32_96 dim 1 : vector<8x256xf32>, i32 -> vector<8x256xf32>
    %c7_97 = arith.constant 7 : index
    %c0_98 = arith.constant 0 : index
    %131 = vector.load %arg1[%c7_97, %c0_98] : memref<9x256xf32, #tpu.memory_space<vmem>>, vector<1x256xf32>
    %132 = vector.broadcast %131 : vector<1x256xf32> to vector<8x256xf32>
    %133 = arith.mulf %130, %132 : vector<8x256xf32>
    %c7_99 = arith.constant 7 : index
    %c0_100 = arith.constant 0 : index
    %c0_101 = arith.constant 0 : index
    %134 = vector.load %arg4[%c7_99, %c0_100, %c0_101] : memref<9x8x8xf32, #tpu.memory_space<vmem>>, vector<1x8x8xf32>
    %135 = vector.shape_cast %134 : vector<1x8x8xf32> to vector<8x8xf32>
    %cst_102 = arith.constant dense<0.000000e+00> : vector<8x256xf32>
    %136 = tpu.matmul %135, %133, %cst_102 {dimension_numbers = #tpu.dot_dimension_numbers<[1], [0], [0], [1], [0, 0, 1, 1], [], []>} : vector<8x8xf32>, vector<8x256xf32>, vector<8x256xf32> -> vector<8x256xf32>
    %137 = arith.addf %129, %136 : vector<8x256xf32>
    %c239_i32_103 = arith.constant 239 : i32
    %138 = tpu.dynamic_rotate %74 by %c239_i32_103 dim 1 : vector<8x256xf32>, i32 -> vector<8x256xf32>
    %c8_104 = arith.constant 8 : index
    %c0_105 = arith.constant 0 : index
    %139 = vector.load %arg1[%c8_104, %c0_105] : memref<9x256xf32, #tpu.memory_space<vmem>>, vector<1x256xf32>
    %140 = vector.broadcast %139 : vector<1x256xf32> to vector<8x256xf32>
    %141 = arith.mulf %138, %140 : vector<8x256xf32>
    %c8_106 = arith.constant 8 : index
    %c0_107 = arith.constant 0 : index
    %c0_108 = arith.constant 0 : index
    %142 = vector.load %arg4[%c8_106, %c0_107, %c0_108] : memref<9x8x8xf32, #tpu.memory_space<vmem>>, vector<1x8x8xf32>
    %143 = vector.shape_cast %142 : vector<1x8x8xf32> to vector<8x8xf32>
    %cst_109 = arith.constant dense<0.000000e+00> : vector<8x256xf32>
    %144 = tpu.matmul %143, %141, %cst_109 {dimension_numbers = #tpu.dot_dimension_numbers<[1], [0], [0], [1], [0, 0, 1, 1], [], []>} : vector<8x8xf32>, vector<8x256xf32>, vector<8x256xf32> -> vector<8x256xf32>
    %145 = arith.addf %137, %144 : vector<8x256xf32>
    %cst_110 = arith.constant 0.000000e+00 : f32
    %146 = vector.broadcast %cst_110 : f32 to vector<8x256xf32>
    %147 = arith.maximumf %145, %146 : vector<8x256xf32>
    %c0_111 = arith.constant 0 : index
    %c0_112 = arith.constant 0 : index
    %c0_113 = arith.constant 0 : index
    %148 = vector.load %arg7[%c0_111, %c0_112, %c0_113] : memref<1x8x256xf32, #tpu.memory_space<vmem>>, vector<1x8x256xf32>
    %149 = vector.shape_cast %148 : vector<1x8x256xf32> to vector<8x256xf32>
    %150 = vector.shape_cast %147 : vector<8x256xf32> to vector<1x8x256xf32>
    tpu.vector_store %arg7[%c0_111, %c0_112, %c0_113], %150 {strides = array<i32>} : memref<1x8x256xf32, #tpu.memory_space<vmem>>, vector<1x8x256xf32>,
    return
  }
  func.func @transform_0(%arg0: i32) -> (i32, i32) {
    %c0_i32 = arith.constant 0 : i32
    %c0_i32_0 = arith.constant 0 : i32
    %c0_i32_1 = arith.constant 0 : i32
    return %c0_i32, %c0_i32_0 : i32, i32
  }
  func.func @transform_1(%arg0: i32) -> (i32, i32, i32) {
    %c0_i32 = arith.constant 0 : i32
    %c0_i32_0 = arith.constant 0 : i32
    %c0_i32_1 = arith.constant 0 : i32
    %c0_i32_2 = arith.constant 0 : i32
    return %c0_i32, %c0_i32_0, %c0_i32_1 : i32, i32, i32
  }
  func.func @transform_2(%arg0: i32) -> (i32, i32) {
    %c0_i32 = arith.constant 0 : i32
    %c0_i32_0 = arith.constant 0 : i32
    %c0_i32_1 = arith.constant 0 : i32
    return %c0_i32, %c0_i32_0 : i32, i32
  }
  func.func @transform_3(%arg0: i32) -> (i32, i32, i32) {
    %c0_i32 = arith.constant 0 : i32
    %c0_i32_0 = arith.constant 0 : i32
    %c0_i32_1 = arith.constant 0 : i32
    %c0_i32_2 = arith.constant 0 : i32
    return %c0_i32, %c0_i32_0, %c0_i32_1 : i32, i32, i32
  }
  func.func @transform_4(%arg0: i32) -> (i32, i32) {
    %c0_i32 = arith.constant 0 : i32
    %c0_i32_0 = arith.constant 0 : i32
    %c0_i32_1 = arith.constant 0 : i32
    return %c0_i32, %c0_i32_0 : i32, i32
  }
  func.func @transform_5(%arg0: i32) -> (i32, i32, i32) {
    %c0_i32 = arith.constant 0 : i32
    %c0_i32_0 = arith.constant 0 : i32
    %c0_i32_1 = arith.constant 0 : i32
    return %arg0, %c0_i32, %c0_i32_0 : i32, i32, i32
  }
  func.func @transform_6(%arg0: i32) -> (i32, i32, i32) {
    %c0_i32 = arith.constant 0 : i32
    %c0_i32_0 = arith.constant 0 : i32
    %c0_i32_1 = arith.constant 0 : i32
    return %arg0, %c0_i32, %c0_i32_0 : i32, i32, i32
  }
}

</mosaic_0001>

<llo_original>
// kernel: tpu_custom_call.1
$region0: #{tpu_custom_call.1}
  #allocation0 [shape = 'u32[]', space=smem, size = 0x4, offset = 0x4, fixed_abs, tag = 'smem constant byte address 0x4 - core index']
  #allocation1 [shape = 'u32[144,128]{1,0:T(1,128)}', space=vmem, size = 0x12000, scoped, tag = 'internal scratch']
  %s0 = inlined_call_operand.vmem [shape: f32[9,256], index: 0, kind: input, shape index: {}]
  %s1 = inlined_call_operand.vmem [shape: f32[9,8,8], index: 1, kind: input, shape index: {}]
  %s2 = inlined_call_operand.vmem [shape: f32[8,1], index: 2, kind: input, shape index: {}]
  %s3 = inlined_call_operand.vmem [shape: f32[9,8,8], index: 3, kind: input, shape index: {}]
  %s4 = inlined_call_operand.vmem [shape: f32[8,1], index: 4, kind: input, shape index: {}]
  %s5 = inlined_call_operand.vmem [shape: f32[2,8,256], index: 5, kind: input, shape index: {}]
  %s6 = inlined_call_operand.hbm [shape: f32[2,8,256], index: 6, kind: output, shape index: {}]
  %s7 = sld [smem:[#allocation0]]
  $region57: #{tpu_custom_call.1} parent=0
    _
  %s9 = ssub.s32 1, %s7
  %s10 = scalar_select 0, %s9, %s7
  $region1: #{tpu_custom_call.1} parent=0
    #allocation2 [shape = 'u8[16384]{0}', space=vmem, size = 0x4000, scoped, tag = 'output window, operand 0']
    #allocation3 [shape = 's32[2]{0}', space=sflag, size = 0x8, scoped, tag = 'scoped memory for tpu_custom_call.1']
    %11 = vsyncpa [#allocation3], 0
    %s12 = scalar_lea.sflag [#allocation3], 1
    %13 = vsyncpa %s12, 0
    loop: start=0, step=1, limit=4
    $region2: #{tpu_custom_call.1} parent=1 // loop_pre_header
      _
    $region3: #{tpu_custom_call.1} parent=1 // loop_header
      %s15 = sphi 0, %s19
      %p16 = scmp.ge.s32.totalorder %s15, 4
      %s23 = sphi 0, %s23
      %s25 = sphi 0, %s23
      %s26 = sphi 0, %s25
      %s40 = sphi 0, %s26
      %s44 = sphi 0, %s44
      %s46 = sphi 0, %s44
      %s47 = sphi 0, %s46
      %s61 = sphi 0, %s47
      %s65 = sphi 0, %s65
      %s67 = sphi 0, %s65
      %s68 = sphi 0, %s67
      %s82 = sphi 0, %s68
      %s86 = sphi 0, %s86
      %s88 = sphi 0, %s86
      %s89 = sphi 0, %s88
      %s103 = sphi 0, %s89
      %s107 = sphi 0, %s107
      %s109 = sphi 0, %s107
      %s110 = sphi 0, %s109
      %s124 = sphi 0, %s110
      %s130 = sphi 0, %s132
      %s133 = sphi 0, %s130
      %s134 = sphi 0, %s133
      %s150 = sphi 0, %s134
      %s156 = sphi 0, %s158
      %s159 = sphi 0, %s156
      %s160 = sphi 0, %s159
      %s176 = sphi 0, %s160
    $region4: #{tpu_custom_call.1} parent=1 // loop_header_branch
      %18 = sbr.rel (%p16) target = $region8
    $region5: #{tpu_custom_call.1} parent=1 // loop_body
      %s20 = ssub.s32 %s15, 1
      %s21 = ssub.s32 %s15, 2
      %s22 = sadd.s32 %s15, 1
      %s24 = sadd.s32 %s23, 1
      %p27 = scmp.eq.s32.totalorder %s15, 1
      %p28 = scmp.ne.s32.totalorder %s23, %s25
      %p29 = scmp.eq.s32.totalorder %s15, 0
      %p30 = por %p28, %p29
      %p31 = scmp.ne.s32.totalorder %s23, %s25
      %p32 = scmp.eq.s32.totalorder %s20, 1
      %p33 = por %p31, %p32
      %p34 = scmp.ne.s32.totalorder %s25, %s26
      %p35 = scmp.eq.s32.totalorder %s20, 0
      %p36 = por %p34, %p35
      %p37 = scmp.ne.s32.totalorder %s25, %s26
      %p38 = scmp.eq.s32.totalorder %s21, 1
      %p39 = por %p37, %p38
      %p41 = scmp.ne.s32.totalorder %s26, %s40
      %p42 = scmp.eq.s32.totalorder %s21, 0
      %p43 = por %p41, %p42
      %s45 = sadd.s32 %s44, 1
      %p48 = scmp.eq.s32.totalorder %s15, 1
      %p49 = scmp.ne.s32.totalorder %s44, %s46
      %p50 = scmp.eq.s32.totalorder %s15, 0
      %p51 = por %p49, %p50
      %p52 = scmp.ne.s32.totalorder %s44, %s46
      %p53 = scmp.eq.s32.totalorder %s20, 1
      %p54 = por %p52, %p53
      %p55 = scmp.ne.s32.totalorder %s46, %s47
      %p56 = scmp.eq.s32.totalorder %s20, 0
      %p57 = por %p55, %p56
      %p58 = scmp.ne.s32.totalorder %s46, %s47
      %p59 = scmp.eq.s32.totalorder %s21, 1
      %p60 = por %p58, %p59
      %p62 = scmp.ne.s32.totalorder %s47, %s61
      %p63 = scmp.eq.s32.totalorder %s21, 0
      %p64 = por %p62, %p63
      %s66 = sadd.s32 %s65, 1
      %p69 = scmp.eq.s32.totalorder %s15, 1
      %p70 = scmp.ne.s32.totalorder %s65, %s67
      %p71 = scmp.eq.s32.totalorder %s15, 0
      %p72 = por %p70, %p71
      %p73 = scmp.ne.s32.totalorder %s65, %s67
      %p74 = scmp.eq.s32.totalorder %s20, 1
      %p75 = por %p73, %p74
      %p76 = scmp.ne.s32.totalorder %s67, %s68
      %p77 = scmp.eq.s32.totalorder %s20, 0
      %p78 = por %p76, %p77
      %p79 = scmp.ne.s32.totalorder %s67, %s68
      %p80 = scmp.eq.s32.totalorder %s21, 1
      %p81 = por %p79, %p80
      %p83 = scmp.ne.s32.totalorder %s68, %s82
      %p84 = scmp.eq.s32.totalorder %s21, 0
      %p85 = por %p83, %p84
      %s87 = sadd.s32 %s86, 1
      %p90 = scmp.eq.s32.totalorder %s15, 1
      %p91 = scmp.ne.s32.totalorder %s86, %s88
      %p92 = scmp.eq.s32.totalorder %s15, 0
      %p93 = por %p91, %p92
      %p94 = scmp.ne.s32.totalorder %s86, %s88
      %p95 = scmp.eq.s32.totalorder %s20, 1
      %p96 = por %p94, %p95
      %p97 = scmp.ne.s32.totalorder %s88, %s89
      %p98 = scmp.eq.s32.totalorder %s20, 0
      %p99 = por %p97, %p98
      %p100 = scmp.ne.s32.totalorder %s88, %s89
      %p101 = scmp.eq.s32.totalorder %s21, 1
      %p102 = por %p100, %p101
      %p104 = scmp.ne.s32.totalorder %s89, %s103
      %p105 = scmp.eq.s32.totalorder %s21, 0
      %p106 = por %p104, %p105
      %s108 = sadd.s32 %s107, 1
      %p111 = scmp.eq.s32.totalorder %s15, 1
      %p112 = scmp.ne.s32.totalorder %s107, %s109
      %p113 = scmp.eq.s32.totalorder %s15, 0
      %p114 = por %p112, %p113
      %p115 = scmp.ne.s32.totalorder %s107, %s109
      %p116 = scmp.eq.s32.totalorder %s20, 1
      %p117 = por %p115, %p116
      %p118 = scmp.ne.s32.totalorder %s109, %s110
      %p119 = scmp.eq.s32.totalorder %s20, 0
      %p120 = por %p118, %p119
      %p121 = scmp.ne.s32.totalorder %s109, %s110
      %p122 = scmp.eq.s32.totalorder %s21, 1
      %p123 = por %p121, %p122
      %p125 = scmp.ne.s32.totalorder %s110, %s124
      %p126 = scmp.eq.s32.totalorder %s21, 0
      %p127 = por %p125, %p126
      %s128 = ssub.s32 %s15, %s22
      %p129 = scmp.eq.s32.totalorder %s128, 0
      %s131 = sadd.s32 %s130, 1
      %s132 = scalar_select %p129, %s130, %s131
      %p135 = pneg %p129
      %p136 = scmp.eq.s32.totalorder %s15, 1
      %p137 = por %p135, %p136
      %p138 = scmp.ne.s32.totalorder %s130, %s133
      %p139 = scmp.eq.s32.totalorder %s15, 0
      %p140 = por %p138, %p139
      %p141 = scmp.ne.s32.totalorder %s130, %s133
      %p142 = scmp.eq.s32.totalorder %s20, 1
      %p143 = por %p141, %p142
      %p144 = scmp.ne.s32.totalorder %s133, %s134
      %p145 = scmp.eq.s32.totalorder %s20, 0
      %p146 = por %p144, %p145
      %p147 = scmp.ne.s32.totalorder %s133, %s134
      %p148 = scmp.eq.s32.totalorder %s21, 1
      %p149 = por %p147, %p148
      %p151 = scmp.ne.s32.totalorder %s134, %s150
      %p152 = scmp.eq.s32.totalorder %s21, 0
      %p153 = por %p151, %p152
      %s154 = ssub.s32 %s15, %s22
      %p155 = scmp.eq.s32.totalorder %s154, 0
      %s157 = sadd.s32 %s156, 1
      %s158 = scalar_select %p155, %s156, %s157
      %p161 = pneg %p155
      %p162 = scmp.eq.s32.totalorder %s15, 1
      %p163 = por %p161, %p162
      %p164 = scmp.ne.s32.totalorder %s156, %s159
      %p165 = scmp.eq.s32.totalorder %s15, 0
      %p166 = por %p164, %p165
      %p167 = scmp.ne.s32.totalorder %s156, %s159
      %p168 = scmp.eq.s32.totalorder %s20, 1
      %p169 = por %p167, %p168
      %p170 = scmp.ne.s32.totalorder %s159, %s160
      %p171 = scmp.eq.s32.totalorder %s20, 0
      %p172 = por %p170, %p171
      %p173 = scmp.ne.s32.totalorder %s159, %s160
      %p174 = scmp.eq.s32.totalorder %s21, 1
      %p175 = por %p173, %p174
      %p177 = scmp.ne.s32.totalorder %s160, %s176
      %p178 = scmp.eq.s32.totalorder %s21, 0
      %p179 = por %p177, %p178
      %p180 = scmp.le.s32.totalorder 1, %s15
      %p181 = scmp.lt.s32.totalorder %s15, 3
      %p182 = pnand %p180, %p181
      %p183 = pneg %p182
      // Predicated region
      $region9: #{tpu_custom_call.1} parent=5 // pred_check
        _
      $region10: #{tpu_custom_call.1} parent=5 // pred_check_branch
        %185 = sbr.rel (%p182) target = $region12
      $region11: #{tpu_custom_call.1} parent=5 // pred_region
        %s186 = ssub.s32 %s15, 1
        // Predicated region
        $region13: #{tpu_custom_call.1} parent=11 // pred_check
          %p187 = pneg %p36
        $region14: #{tpu_custom_call.1} parent=11 // pred_check_branch
          %189 = sbr.rel (%p187) target = $region16
        $region15: #{tpu_custom_call.1} parent=11 // pred_region
          _
        $region16: #{tpu_custom_call.1} parent=11 // pred_fallthru
          _
        // Predicated region
        $region17: #{tpu_custom_call.1} parent=11 // pred_check
          %p190 = pneg %p57
        $region18: #{tpu_custom_call.1} parent=11 // pred_check_branch
          %192 = sbr.rel (%p190) target = $region20
        $region19: #{tpu_custom_call.1} parent=11 // pred_region
          _
        $region20: #{tpu_custom_call.1} parent=11 // pred_fallthru
          _
        // Predicated region
        $region21: #{tpu_custom_call.1} parent=11 // pred_check
          %p193 = pneg %p78
        $region22: #{tpu_custom_call.1} parent=11 // pred_check_branch
          %195 = sbr.rel (%p193) target = $region24
        $region23: #{tpu_custom_call.1} parent=11 // pred_region
          _
        $region24: #{tpu_custom_call.1} parent=11 // pred_fallthru
          _
        // Predicated region
        $region25: #{tpu_custom_call.1} parent=11 // pred_check
          %p196 = pneg %p99
        $region26: #{tpu_custom_call.1} parent=11 // pred_check_branch
          %198 = sbr.rel (%p196) target = $region28
        $region27: #{tpu_custom_call.1} parent=11 // pred_region
          _
        $region28: #{tpu_custom_call.1} parent=11 // pred_fallthru
          _
        // Predicated region
        $region29: #{tpu_custom_call.1} parent=11 // pred_check
          %p199 = pneg %p120
        $region30: #{tpu_custom_call.1} parent=11 // pred_check_branch
          %201 = sbr.rel (%p199) target = $region32
        $region31: #{tpu_custom_call.1} parent=11 // pred_region
          _
        $region32: #{tpu_custom_call.1} parent=11 // pred_fallthru
          _
      $region12: #{tpu_custom_call.1} parent=5 // pred_fallthru
        _
      %p202 = scmp.lt.s32.totalorder %s15, 2
      // Predicated region
      $region33: #{tpu_custom_call.1} parent=5 // pred_check
        %p203 = pneg %p202
      $region34: #{tpu_custom_call.1} parent=5 // pred_check_branch
        %205 = sbr.rel (%p203) target = $region36
      $region35: #{tpu_custom_call.1} parent=5 // pred_region
        // Predicated region
        $region37: #{tpu_custom_call.1} parent=35 // pred_check
          %p206 = pneg %p140
        $region38: #{tpu_custom_call.1} parent=35 // pred_check_branch
          %208 = sbr.rel (%p206) target = $region40
        $region39: #{tpu_custom_call.1} parent=35 // pred_region
          %p209 = scmp.lt.s32.totalorder %s15, 1
          %s210 = scalar_select %p209, %s15, 1
          %s211 = smul.addr %s210, 2
          %s212 = smul.addr %s211, 8
          %s213 = scalar_lea.vmem %s5, %s212
        $region40: #{tpu_custom_call.1} parent=35 // pred_fallthru
          _
      $region36: #{tpu_custom_call.1} parent=5 // pred_fallthru
        _
      %p214 = scmp.le.s32.totalorder 1, %s15
      %p215 = scmp.lt.s32.totalorder %s15, 3
      %p216 = pnand %p214, %p215
      %p217 = pneg %p216
      // Predicated region
      $region41: #{tpu_custom_call.1} parent=5 // pred_check
        _
      $region42: #{tpu_custom_call.1} parent=5 // pred_check_branch
        %219 = sbr.rel (%p216) target = $region44
      $region43: #{tpu_custom_call.1} parent=5 // pred_region
        %s220 = ssub.s32 %s15, 1
        %p221 = pneg %p36
        %p222 = pneg %p33
        %p223 = pneg %p57
        %p224 = pneg %p54
        %p225 = pneg %p78
        %p226 = pneg %p75
        %p227 = pneg %p99
        %p228 = pneg %p96
        %p229 = pneg %p120
        %p230 = pneg %p117
        %p231 = scmp.lt.s32.totalorder %s20, 1
        %s232 = scalar_select %p231, %s20, 1
        %s233 = smul.addr %s232, 2
        %s234 = smul.addr %s233, 8
        %s235 = scalar_lea.vmem %s5, %s234
        %p236 = pneg %p146
        %p237 = pneg %p143
        %p238 = pneg %p172
        %p239 = pneg %p169
        %s240 = sand.u32 %s159, 1
        %s241 = scalar_lea.sflag [#allocation3], %s240
        %s242 = sand.u32 %s159, 1
        %s243 = smul.addr %s242, 16
        %s244 = scalar_lea.vmem [#allocation2], %s243
        %p245 = scmp.lt.s32.totalorder %s20, 1
        %s246 = scalar_select %p245, %s20, 1
        %s247 = smul.addr %s246, 2
        %s248 = smul.addr %s247, 8
        %s249 = scalar_lea.vmem %s5, %s248
        %v250 = vld [vmem:[%s249] sm:$0xff]
        %v251 = vld [vmem:[%s249 + $0x8] sm:$0xff]
        %v252 = vld [vmem:[%s2] sm:$0xff]
        %254 = vset.pattern.permute.xlu0 0
        %255 = vperm.xlu0 %254, %v252
        %v256 = vpop.permute.xlu0 %255
        %258 = vrot.lane.b32.xlu0 %v250, 17
        %v259 = vpop.permute.xlu0 %258
        %260 = vrot.lane.b32.xlu0 %v251, 17
        %v261 = vpop.permute.xlu0 %260
        %v262 = vlaneseq
        %v263 = vand.u32 %v262, 127
        %vm264 = vcmp.lt.s32.totalorder %v263, 17
        %v265 = vsel %vm264, %v259, %v261
        %v266 = vsel %vm264, %v261, %v259
        %v267 = vld [vmem:[%s0] ss:$8 sm:$0x3]
        %v269 = vlaneseq
        %v270 = vshrl.u32 %v269, 7
        %v271 = vsub.s32 0, %v270
        %v272 = vrot.slane %v267, %v271
        %v273 = vlaneseq
        %v274 = vshrl.u32 %v273, 7
        %v275 = vsub.s32 1, %v274
        %v276 = vrot.slane %v267, %v275
        %v279 = vmul.f32 %v266, %v272
        %v280 = vmul.f32 %v265, %v276
        %v281 = vld [vmem:[%s1] sm:$0xff]
        %vm282 = vcmask 64512
        %v284 = vsel %vm282, %v281, 0
        %286 = vmatprep.subr.mxu0 %v280
        %287 = vmatpush1.msra.mxu0 %v279
        %288 = vmatprep.subr.mxu0 0.0
        %289 = vmatpush1.msra.mxu0 0.0
        %290 = vmatprep.subr.mxu0 0.0
        %291 = vmatpush1.msra.mxu0 0.0
        %292 = vmatprep.subr.mxu0 0.0
        %293 = vmatpush1.msra.mxu0 0.0
        %294 = vmatprep.subr.mxu0 0.0
        %295 = vmatpush1.msra.mxu0 0.0
        %296 = vmatprep.subr.mxu0 0.0
        %297 = vmatpush1.msra.mxu0 0.0
        %298 = vmatprep.subr.mxu0 0.0
        %299 = vmatpush1.msra.mxu0 0.0
        %300 = vmatprep.subr.mxu0 0.0
        %301 = vmatpush1.msra.mxu0 0.0
        %302 = vmatprep.subr.mxu0 0.0
        %303 = vmatpush1.msra.mxu0 0.0
        %304 = vmatprep.subr.mxu0 0.0
        %305 = vmatpush1.msra.mxu0 0.0
        %306 = vmatprep.subr.mxu0 0.0
        %307 = vmatpush1.msra.mxu0 0.0
        %308 = vmatprep.subr.mxu0 0.0
        %309 = vmatpush1.msra.mxu0 0.0
        %310 = vmatprep.subr.mxu0 0.0
        %311 = vmatpush1.msra.mxu0 0.0
        %312 = vmatprep.subr.mxu0 0.0
        %313 = vmatpush1.msra.mxu0 0.0
        %314 = vmatprep.subr.mxu0 0.0
        %315 = vmatpush1.msra.mxu0 0.0
        %316 = vmatprep.subr.mxu0 0.0
        %317 = vmatpush1.msra.mxu0 0.0
        %318 = vmatprep.subr.mxu0 0.0
        %319 = vmatpush1.msra.mxu0 0.0
        %320 = vmatprep.subr.mxu0 0.0
        %321 = vmatpush1.msra.mxu0 0.0
        %322 = vmatprep.subr.mxu0 0.0
        %323 = vmatpush1.msra.mxu0 0.0
        %324 = vmatprep.subr.mxu0 0.0
        %325 = vmatpush1.msra.mxu0 0.0
        %326 = vmatprep.subr.mxu0 0.0
        %327 = vmatpush1.msra.mxu0 0.0
        %328 = vmatprep.subr.mxu0 0.0
        %329 = vmatpush1.msra.mxu0 0.0
        %330 = vmatprep.subr.mxu0 0.0
        %331 = vmatpush1.msra.mxu0 0.0
        %332 = vmatprep.subr.mxu0 0.0
        %333 = vmatpush1.msra.mxu0 0.0
        %334 = vmatprep.subr.mxu0 0.0
        %335 = vmatpush1.msra.mxu0 0.0
        %336 = vmatprep.subr.mxu0 0.0
        %337 = vmatpush1.msra.mxu0 0.0
        %338 = vmatprep.subr.mxu0 0.0
        %339 = vmatpush1.msra.mxu0 0.0
        %340 = vmatprep.subr.mxu0 0.0
        %341 = vmatpush1.msra.mxu0 0.0
        %342 = vmatprep.subr.mxu0 0.0
        %343 = vmatpush1.msra.mxu0 0.0
        %344 = vmatprep.subr.mxu0 0.0
        %345 = vmatpush1.msra.mxu0 0.0
        %346 = vmatprep.subr.mxu0 0.0
        %347 = vmatpush1.msra.mxu0 0.0
        %348 = vmatprep.subr.mxu0 0.0
        %349 = vmatpush1.msra.mxu0 0.0
        %350 = vmatprep.mubr.f32.mxu0 0.0
        %351 = vmatmul.mubr.f32.gmra.mrb[0].mxu0 %v284
        %v352 = vpop.f32.mrb[0].mxu0
        %v353 = vadd.f32 0.0, %v352
        %v354 = vpop.f32.mrb[0].mxu0
        %v355 = vadd.f32 0.0, %v354
        %356 = vdwg.mxu0
        %v357 = vadd.f32 %v256, %v353
        %v358 = vadd.f32 %v256, %v355
        %359 = vrot.lane.b32.xlu0 %v250, 16
        %v360 = vpop.permute.xlu0 %359
        %361 = vrot.lane.b32.xlu0 %v251, 16
        %v362 = vpop.permute.xlu0 %361
        %vm363 = vcmp.lt.s32.totalorder %v263, 16
        %v364 = vsel %vm363, %v360, %v362
        %v365 = vsel %vm363, %v362, %v360
        %s366 = scalar_lea.vmem %s0, 1
        %v367 = vld [vmem:[%s366] ss:$8 sm:$0x3]
        %v369 = vlaneseq
        %v370 = vshrl.u32 %v369, 7
        %v371 = vsub.s32 0, %v370
        %v372 = vrot.slane %v367, %v371
        %v373 = vlaneseq
        %v374 = vshrl.u32 %v373, 7
        %v375 = vsub.s32 1, %v374
        %v376 = vrot.slane %v367, %v375
        %v379 = vmul.f32 %v365, %v372
        %v380 = vmul.f32 %v364, %v376
        %s381 = scalar_lea.vmem %s1, 8
        %v382 = vld [vmem:[%s381] sm:$0xff]
        %v384 = vsel %vm282, %v382, 0
        %386 = vmatprep.subr.mxu0 %v380
        %387 = vmatpush1.msra.mxu0 %v379
        %388 = vmatprep.subr.mxu0 0.0
        %389 = vmatpush1.msra.mxu0 0.0
        %390 = vmatprep.subr.mxu0 0.0
        %391 = vmatpush1.msra.mxu0 0.0
        %392 = vmatprep.subr.mxu0 0.0
        %393 = vmatpush1.msra.mxu0 0.0
        %394 = vmatprep.subr.mxu0 0.0
        %395 = vmatpush1.msra.mxu0 0.0
        %396 = vmatprep.subr.mxu0 0.0
        %397 = vmatpush1.msra.mxu0 0.0
        %398 = vmatprep.subr.mxu0 0.0
        %399 = vmatpush1.msra.mxu0 0.0
        %400 = vmatprep.subr.mxu0 0.0
        %401 = vmatpush1.msra.mxu0 0.0
        %402 = vmatprep.subr.mxu0 0.0
        %403 = vmatpush1.msra.mxu0 0.0
        %404 = vmatprep.subr.mxu0 0.0
        %405 = vmatpush1.msra.mxu0 0.0
        %406 = vmatprep.subr.mxu0 0.0
        %407 = vmatpush1.msra.mxu0 0.0
        %408 = vmatprep.subr.mxu0 0.0
        %409 = vmatpush1.msra.mxu0 0.0
        %410 = vmatprep.subr.mxu0 0.0
        %411 = vmatpush1.msra.mxu0 0.0
        %412 = vmatprep.subr.mxu0 0.0
        %413 = vmatpush1.msra.mxu0 0.0
        %414 = vmatprep.subr.mxu0 0.0
        %415 = vmatpush1.msra.mxu0 0.0
        %416 = vmatprep.subr.mxu0 0.0
        %417 = vmatpush1.msra.mxu0 0.0
        %418 = vmatprep.subr.mxu0 0.0
        %419 = vmatpush1.msra.mxu0 0.0
        %420 = vmatprep.subr.mxu0 0.0
        %421 = vmatpush1.msra.mxu0 0.0
        %422 = vmatprep.subr.mxu0 0.0
        %423 = vmatpush1.msra.mxu0 0.0
        %424 = vmatprep.subr.mxu0 0.0
        %425 = vmatpush1.msra.mxu0 0.0
        %426 = vmatprep.subr.mxu0 0.0
        %427 = vmatpush1.msra.mxu0 0.0
        %428 = vmatprep.subr.mxu0 0.0
        %429 = vmatpush1.msra.mxu0 0.0
        %430 = vmatprep.subr.mxu0 0.0
        %431 = vmatpush1.msra.mxu0 0.0
        %432 = vmatprep.subr.mxu0 0.0
        %433 = vmatpush1.msra.mxu0 0.0
        %434 = vmatprep.subr.mxu0 0.0
        %435 = vmatpush1.msra.mxu0 0.0
        %436 = vmatprep.subr.mxu0 0.0
        %437 = vmatpush1.msra.mxu0 0.0
        %438 = vmatprep.subr.mxu0 0.0
        %439 = vmatpush1.msra.mxu0 0.0
        %440 = vmatprep.subr.mxu0 0.0
        %441 = vmatpush1.msra.mxu0 0.0
        %442 = vmatprep.subr.mxu0 0.0
        %443 = vmatpush1.msra.mxu0 0.0
        %444 = vmatprep.subr.mxu0 0.0
        %445 = vmatpush1.msra.mxu0 0.0
        %446 = vmatprep.subr.mxu0 0.0
        %447 = vmatpush1.msra.mxu0 0.0
        %448 = vmatprep.subr.mxu0 0.0
        %449 = vmatpush1.msra.mxu0 0.0
        %450 = vmatprep.mubr.f32.mxu0 0.0
        %451 = vmatmul.mubr.f32.gmra.mrb[0].mxu0 %v384
        %v452 = vpop.f32.mrb[0].mxu0
        %v453 = vadd.f32 0.0, %v452
        %v454 = vpop.f32.mrb[0].mxu0
        %v455 = vadd.f32 0.0, %v454
        %456 = vdwg.mxu0
        %v457 = vadd.f32 %v357, %v453
        %v458 = vadd.f32 %v358, %v455
        %459 = vrot.lane.b32.xlu0 %v250, 15
        %v460 = vpop.permute.xlu0 %459
        %461 = vrot.lane.b32.xlu0 %v251, 15
        %v462 = vpop.permute.xlu0 %461
        %vm463 = vcmp.lt.s32.totalorder %v263, 15
        %v464 = vsel %vm463, %v460, %v462
        %v465 = vsel %vm463, %v462, %v460
        %s466 = scalar_lea.vmem %s0, 2
        %v467 = vld [vmem:[%s466] ss:$8 sm:$0x3]
        %v469 = vlaneseq
        %v470 = vshrl.u32 %v469, 7
        %v471 = vsub.s32 0, %v470
        %v472 = vrot.slane %v467, %v471
        %v473 = vlaneseq
        %v474 = vshrl.u32 %v473, 7
        %v475 = vsub.s32 1, %v474
        %v476 = vrot.slane %v467, %v475
        %v479 = vmul.f32 %v465, %v472
        %v480 = vmul.f32 %v464, %v476
        %s481 = scalar_lea.vmem %s1, 16
        %v482 = vld [vmem:[%s481] sm:$0xff]
        %v484 = vsel %vm282, %v482, 0
        %486 = vmatprep.subr.mxu0 %v480
        %487 = vmatpush1.msra.mxu0 %v479
        %488 = vmatprep.subr.mxu0 0.0
        %489 = vmatpush1.msra.mxu0 0.0
        %490 = vmatprep.subr.mxu0 0.0
        %491 = vmatpush1.msra.mxu0 0.0
        %492 = vmatprep.subr.mxu0 0.0
        %493 = vmatpush1.msra.mxu0 0.0
        %494 = vmatprep.subr.mxu0 0.0
        %495 = vmatpush1.msra.mxu0 0.0
        %496 = vmatprep.subr.mxu0 0.0
        %497 = vmatpush1.msra.mxu0 0.0
        %498 = vmatprep.subr.mxu0 0.0
        %499 = vmatpush1.msra.mxu0 0.0
        %500 = vmatprep.subr.mxu0 0.0
        %501 = vmatpush1.msra.mxu0 0.0
        %502 = vmatprep.subr.mxu0 0.0
        %503 = vmatpush1.msra.mxu0 0.0
        %504 = vmatprep.subr.mxu0 0.0
        %505 = vmatpush1.msra.mxu0 0.0
        %506 = vmatprep.subr.mxu0 0.0
        %507 = vmatpush1.msra.mxu0 0.0
        %508 = vmatprep.subr.mxu0 0.0
        %509 = vmatpush1.msra.mxu0 0.0
        %510 = vmatprep.subr.mxu0 0.0
        %511 = vmatpush1.msra.mxu0 0.0
        %512 = vmatprep.subr.mxu0 0.0
        %513 = vmatpush1.msra.mxu0 0.0
        %514 = vmatprep.subr.mxu0 0.0
        %515 = vmatpush1.msra.mxu0 0.0
        %516 = vmatprep.subr.mxu0 0.0
        %517 = vmatpush1.msra.mxu0 0.0
        %518 = vmatprep.subr.mxu0 0.0
        %519 = vmatpush1.msra.mxu0 0.0
        %520 = vmatprep.subr.mxu0 0.0
        %521 = vmatpush1.msra.mxu0 0.0
        %522 = vmatprep.subr.mxu0 0.0
        %523 = vmatpush1.msra.mxu0 0.0
        %524 = vmatprep.subr.mxu0 0.0
        %525 = vmatpush1.msra.mxu0 0.0
        %526 = vmatprep.subr.mxu0 0.0
        %527 = vmatpush1.msra.mxu0 0.0
        %528 = vmatprep.subr.mxu0 0.0
        %529 = vmatpush1.msra.mxu0 0.0
        %530 = vmatprep.subr.mxu0 0.0
        %531 = vmatpush1.msra.mxu0 0.0
        %532 = vmatprep.subr.mxu0 0.0
        %533 = vmatpush1.msra.mxu0 0.0
        %534 = vmatprep.subr.mxu0 0.0
        %535 = vmatpush1.msra.mxu0 0.0
        %536 = vmatprep.subr.mxu0 0.0
        %537 = vmatpush1.msra.mxu0 0.0
        %538 = vmatprep.subr.mxu0 0.0
        %539 = vmatpush1.msra.mxu0 0.0
        %540 = vmatprep.subr.mxu0 0.0
        %541 = vmatpush1.msra.mxu0 0.0
        %542 = vmatprep.subr.mxu0 0.0
        %543 = vmatpush1.msra.mxu0 0.0
        %544 = vmatprep.subr.mxu0 0.0
        %545 = vmatpush1.msra.mxu0 0.0
        %546 = vmatprep.subr.mxu0 0.0
        %547 = vmatpush1.msra.mxu0 0.0
        %548 = vmatprep.subr.mxu0 0.0
        %549 = vmatpush1.msra.mxu0 0.0
        %550 = vmatprep.mubr.f32.mxu0 0.0
        %551 = vmatmul.mubr.f32.gmra.mrb[0].mxu0 %v484
        %v552 = vpop.f32.mrb[0].mxu0
        %v553 = vadd.f32 0.0, %v552
        %v554 = vpop.f32.mrb[0].mxu0
        %v555 = vadd.f32 0.0, %v554
        %556 = vdwg.mxu0
        %v557 = vadd.f32 %v457, %v553
        %v558 = vadd.f32 %v458, %v555
        %559 = vrot.lane.b32.xlu0 %v250, 1
        %v560 = vpop.permute.xlu0 %559
        %561 = vrot.lane.b32.xlu0 %v251, 1
        %v562 = vpop.permute.xlu0 %561
        %vm563 = vcmp.lt.s32.totalorder %v263, 1
        %v564 = vsel %vm563, %v560, %v562
        %v565 = vsel %vm563, %v562, %v560
        %s566 = scalar_lea.vmem %s0, 3
        %v567 = vld [vmem:[%s566] ss:$8 sm:$0x3]
        %v569 = vlaneseq
        %v570 = vshrl.u32 %v569, 7
        %v571 = vsub.s32 0, %v570
        %v572 = vrot.slane %v567, %v571
        %v573 = vlaneseq
        %v574 = vshrl.u32 %v573, 7
        %v575 = vsub.s32 1, %v574
        %v576 = vrot.slane %v567, %v575
        %v579 = vmul.f32 %v565, %v572
        %v580 = vmul.f32 %v564, %v576
        %s581 = scalar_lea.vmem %s1, 24
        %v582 = vld [vmem:[%s581] sm:$0xff]
        %v584 = vsel %vm282, %v582, 0
        %586 = vmatprep.subr.mxu0 %v580
        %587 = vmatpush1.msra.mxu0 %v579
        %588 = vmatprep.subr.mxu0 0.0
        %589 = vmatpush1.msra.mxu0 0.0
        %590 = vmatprep.subr.mxu0 0.0
        %591 = vmatpush1.msra.mxu0 0.0
        %592 = vmatprep.subr.mxu0 0.0
        %593 = vmatpush1.msra.mxu0 0.0
        %594 = vmatprep.subr.mxu0 0.0
        %595 = vmatpush1.msra.mxu0 0.0
        %596 = vmatprep.subr.mxu0 0.0
        %597 = vmatpush1.msra.mxu0 0.0
        %598 = vmatprep.subr.mxu0 0.0
        %599 = vmatpush1.msra.mxu0 0.0
        %600 = vmatprep.subr.mxu0 0.0
        %601 = vmatpush1.msra.mxu0 0.0
        %602 = vmatprep.subr.mxu0 0.0
        %603 = vmatpush1.msra.mxu0 0.0
        %604 = vmatprep.subr.mxu0 0.0
        %605 = vmatpush1.msra.mxu0 0.0
        %606 = vmatprep.subr.mxu0 0.0
        %607 = vmatpush1.msra.mxu0 0.0
        %608 = vmatprep.subr.mxu0 0.0
        %609 = vmatpush1.msra.mxu0 0.0
        %610 = vmatprep.subr.mxu0 0.0
        %611 = vmatpush1.msra.mxu0 0.0
        %612 = vmatprep.subr.mxu0 0.0
        %613 = vmatpush1.msra.mxu0 0.0
        %614 = vmatprep.subr.mxu0 0.0
        %615 = vmatpush1.msra.mxu0 0.0
        %616 = vmatprep.subr.mxu0 0.0
        %617 = vmatpush1.msra.mxu0 0.0
        %618 = vmatprep.subr.mxu0 0.0
        %619 = vmatpush1.msra.mxu0 0.0
        %620 = vmatprep.subr.mxu0 0.0
        %621 = vmatpush1.msra.mxu0 0.0
        %622 = vmatprep.subr.mxu0 0.0
        %623 = vmatpush1.msra.mxu0 0.0
        %624 = vmatprep.subr.mxu0 0.0
        %625 = vmatpush1.msra.mxu0 0.0
        %626 = vmatprep.subr.mxu0 0.0
        %627 = vmatpush1.msra.mxu0 0.0
        %628 = vmatprep.subr.mxu0 0.0
        %629 = vmatpush1.msra.mxu0 0.0
        %630 = vmatprep.subr.mxu0 0.0
        %631 = vmatpush1.msra.mxu0 0.0
        %632 = vmatprep.subr.mxu0 0.0
        %633 = vmatpush1.msra.mxu0 0.0
        %634 = vmatprep.subr.mxu0 0.0
        %635 = vmatpush1.msra.mxu0 0.0
        %636 = vmatprep.subr.mxu0 0.0
        %637 = vmatpush1.msra.mxu0 0.0
        %638 = vmatprep.subr.mxu0 0.0
        %639 = vmatpush1.msra.mxu0 0.0
        %640 = vmatprep.subr.mxu0 0.0
        %641 = vmatpush1.msra.mxu0 0.0
        %642 = vmatprep.subr.mxu0 0.0
        %643 = vmatpush1.msra.mxu0 0.0
        %644 = vmatprep.subr.mxu0 0.0
        %645 = vmatpush1.msra.mxu0 0.0
        %646 = vmatprep.subr.mxu0 0.0
        %647 = vmatpush1.msra.mxu0 0.0
        %648 = vmatprep.subr.mxu0 0.0
        %649 = vmatpush1.msra.mxu0 0.0
        %650 = vmatprep.mubr.f32.mxu0 0.0
        %651 = vmatmul.mubr.f32.gmra.mrb[0].mxu0 %v584
        %v652 = vpop.f32.mrb[0].mxu0
        %v653 = vadd.f32 0.0, %v652
        %v654 = vpop.f32.mrb[0].mxu0
        %v655 = vadd.f32 0.0, %v654
        %656 = vdwg.mxu0
        %v657 = vadd.f32 %v557, %v653
        %v658 = vadd.f32 %v558, %v655
        %s659 = scalar_lea.vmem %s1, 32
        %v660 = vld [vmem:[%s659] sm:$0xff]
        %v662 = vsel %vm282, %v660, 0
        %664 = vmatprep.subr.mxu0 %v251
        %665 = vmatpush1.msra.mxu0 %v250
        %666 = vmatprep.subr.mxu0 0.0
        %667 = vmatpush1.msra.mxu0 0.0
        %668 = vmatprep.subr.mxu0 0.0
        %669 = vmatpush1.msra.mxu0 0.0
        %670 = vmatprep.subr.mxu0 0.0
        %671 = vmatpush1.msra.mxu0 0.0
        %672 = vmatprep.subr.mxu0 0.0
        %673 = vmatpush1.msra.mxu0 0.0
        %674 = vmatprep.subr.mxu0 0.0
        %675 = vmatpush1.msra.mxu0 0.0
        %676 = vmatprep.subr.mxu0 0.0
        %677 = vmatpush1.msra.mxu0 0.0
        %678 = vmatprep.subr.mxu0 0.0
        %679 = vmatpush1.msra.mxu0 0.0
        %680 = vmatprep.subr.mxu0 0.0
        %681 = vmatpush1.msra.mxu0 0.0
        %682 = vmatprep.subr.mxu0 0.0
        %683 = vmatpush1.msra.mxu0 0.0
        %684 = vmatprep.subr.mxu0 0.0
        %685 = vmatpush1.msra.mxu0 0.0
        %686 = vmatprep.subr.mxu0 0.0
        %687 = vmatpush1.msra.mxu0 0.0
        %688 = vmatprep.subr.mxu0 0.0
        %689 = vmatpush1.msra.mxu0 0.0
        %690 = vmatprep.subr.mxu0 0.0
        %691 = vmatpush1.msra.mxu0 0.0
        %692 = vmatprep.subr.mxu0 0.0
        %693 = vmatpush1.msra.mxu0 0.0
        %694 = vmatprep.subr.mxu0 0.0
        %695 = vmatpush1.msra.mxu0 0.0
        %696 = vmatprep.subr.mxu0 0.0
        %697 = vmatpush1.msra.mxu0 0.0
        %698 = vmatprep.subr.mxu0 0.0
        %699 = vmatpush1.msra.mxu0 0.0
        %700 = vmatprep.subr.mxu0 0.0
        %701 = vmatpush1.msra.mxu0 0.0
        %702 = vmatprep.subr.mxu0 0.0
        %703 = vmatpush1.msra.mxu0 0.0
        %704 = vmatprep.subr.mxu0 0.0
        %705 = vmatpush1.msra.mxu0 0.0
        %706 = vmatprep.subr.mxu0 0.0
        %707 = vmatpush1.msra.mxu0 0.0
        %708 = vmatprep.subr.mxu0 0.0
        %709 = vmatpush1.msra.mxu0 0.0
        %710 = vmatprep.subr.mxu0 0.0
        %711 = vmatpush1.msra.mxu0 0.0
        %712 = vmatprep.subr.mxu0 0.0
        %713 = vmatpush1.msra.mxu0 0.0
        %714 = vmatprep.subr.mxu0 0.0
        %715 = vmatpush1.msra.mxu0 0.0
        %716 = vmatprep.subr.mxu0 0.0
        %717 = vmatpush1.msra.mxu0 0.0
        %718 = vmatprep.subr.mxu0 0.0
        %719 = vmatpush1.msra.mxu0 0.0
        %720 = vmatprep.subr.mxu0 0.0
        %721 = vmatpush1.msra.mxu0 0.0
        %722 = vmatprep.subr.mxu0 0.0
        %723 = vmatpush1.msra.mxu0 0.0
        %724 = vmatprep.subr.mxu0 0.0
        %725 = vmatpush1.msra.mxu0 0.0
        %726 = vmatprep.subr.mxu0 0.0
        %727 = vmatpush1.msra.mxu0 0.0
        %728 = vmatprep.mubr.f32.mxu0 0.0
        %729 = vmatmul.mubr.f32.gmra.mrb[0].mxu0 %v662
        %v730 = vpop.f32.mrb[0].mxu0
        %v731 = vadd.f32 0.0, %v730
        %v732 = vpop.f32.mrb[0].mxu0
        %v733 = vadd.f32 0.0, %v732
        %734 = vdwg.mxu0
        %v735 = vadd.f32 %v657, %v731
        %v736 = vadd.f32 %v658, %v733
        %737 = vrot.lane.b32.xlu0 %v250, 127
        %v738 = vpop.permute.xlu0 %737
        %739 = vrot.lane.b32.xlu0 %v251, 127
        %v740 = vpop.permute.xlu0 %739
        %vm741 = vcmp.lt.s32.totalorder %v263, 127
        %v742 = vsel %vm741, %v738, %v740
        %v743 = vsel %vm741, %v740, %v738
        %s744 = scalar_lea.vmem %s0, 5
        %v745 = vld [vmem:[%s744] ss:$8 sm:$0x3]
        %v747 = vlaneseq
        %v748 = vshrl.u32 %v747, 7
        %v749 = vsub.s32 0, %v748
        %v750 = vrot.slane %v745, %v749
        %v751 = vlaneseq
        %v752 = vshrl.u32 %v751, 7
        %v753 = vsub.s32 1, %v752
        %v754 = vrot.slane %v745, %v753
        %v757 = vmul.f32 %v742, %v750
        %v758 = vmul.f32 %v743, %v754
        %s759 = scalar_lea.vmem %s1, 40
        %v760 = vld [vmem:[%s759] sm:$0xff]
        %v762 = vsel %vm282, %v760, 0
        %764 = vmatprep.subr.mxu0 %v758
        %765 = vmatpush1.msra.mxu0 %v757
        %766 = vmatprep.subr.mxu0 0.0
        %767 = vmatpush1.msra.mxu0 0.0
        %768 = vmatprep.subr.mxu0 0.0
        %769 = vmatpush1.msra.mxu0 0.0
        %770 = vmatprep.subr.mxu0 0.0
        %771 = vmatpush1.msra.mxu0 0.0
        %772 = vmatprep.subr.mxu0 0.0
        %773 = vmatpush1.msra.mxu0 0.0
        %774 = vmatprep.subr.mxu0 0.0
        %775 = vmatpush1.msra.mxu0 0.0
        %776 = vmatprep.subr.mxu0 0.0
        %777 = vmatpush1.msra.mxu0 0.0
        %778 = vmatprep.subr.mxu0 0.0
        %779 = vmatpush1.msra.mxu0 0.0
        %780 = vmatprep.subr.mxu0 0.0
        %781 = vmatpush1.msra.mxu0 0.0
        %782 = vmatprep.subr.mxu0 0.0
        %783 = vmatpush1.msra.mxu0 0.0
        %784 = vmatprep.subr.mxu0 0.0
        %785 = vmatpush1.msra.mxu0 0.0
        %786 = vmatprep.subr.mxu0 0.0
        %787 = vmatpush1.msra.mxu0 0.0
        %788 = vmatprep.subr.mxu0 0.0
        %789 = vmatpush1.msra.mxu0 0.0
        %790 = vmatprep.subr.mxu0 0.0
        %791 = vmatpush1.msra.mxu0 0.0
        %792 = vmatprep.subr.mxu0 0.0
        %793 = vmatpush1.msra.mxu0 0.0
        %794 = vmatprep.subr.mxu0 0.0
        %795 = vmatpush1.msra.mxu0 0.0
        %796 = vmatprep.subr.mxu0 0.0
        %797 = vmatpush1.msra.mxu0 0.0
        %798 = vmatprep.subr.mxu0 0.0
        %799 = vmatpush1.msra.mxu0 0.0
        %800 = vmatprep.subr.mxu0 0.0
        %801 = vmatpush1.msra.mxu0 0.0
        %802 = vmatprep.subr.mxu0 0.0
        %803 = vmatpush1.msra.mxu0 0.0
        %804 = vmatprep.subr.mxu0 0.0
        %805 = vmatpush1.msra.mxu0 0.0
        %806 = vmatprep.subr.mxu0 0.0
        %807 = vmatpush1.msra.mxu0 0.0
        %808 = vmatprep.subr.mxu0 0.0
        %809 = vmatpush1.msra.mxu0 0.0
        %810 = vmatprep.subr.mxu0 0.0
        %811 = vmatpush1.msra.mxu0 0.0
        %812 = vmatprep.subr.mxu0 0.0
        %813 = vmatpush1.msra.mxu0 0.0
        %814 = vmatprep.subr.mxu0 0.0
        %815 = vmatpush1.msra.mxu0 0.0
        %816 = vmatprep.subr.mxu0 0.0
        %817 = vmatpush1.msra.mxu0 0.0
        %818 = vmatprep.subr.mxu0 0.0
        %819 = vmatpush1.msra.mxu0 0.0
        %820 = vmatprep.subr.mxu0 0.0
        %821 = vmatpush1.msra.mxu0 0.0
        %822 = vmatprep.subr.mxu0 0.0
        %823 = vmatpush1.msra.mxu0 0.0
        %824 = vmatprep.subr.mxu0 0.0
        %825 = vmatpush1.msra.mxu0 0.0
        %826 = vmatprep.subr.mxu0 0.0
        %827 = vmatpush1.msra.mxu0 0.0
        %828 = vmatprep.mubr.f32.mxu0 0.0
        %829 = vmatmul.mubr.f32.gmra.mrb[0].mxu0 %v762
        %v830 = vpop.f32.mrb[0].mxu0
        %v831 = vadd.f32 0.0, %v830
        %v832 = vpop.f32.mrb[0].mxu0
        %v833 = vadd.f32 0.0, %v832
        %834 = vdwg.mxu0
        %v835 = vadd.f32 %v735, %v831
        %v836 = vadd.f32 %v736, %v833
        %837 = vrot.lane.b32.xlu0 %v250, 113
        %v838 = vpop.permute.xlu0 %837
        %839 = vrot.lane.b32.xlu0 %v251, 113
        %v840 = vpop.permute.xlu0 %839
        %vm841 = vcmp.lt.s32.totalorder %v263, 113
        %v842 = vsel %vm841, %v838, %v840
        %v843 = vsel %vm841, %v840, %v838
        %s844 = scalar_lea.vmem %s0, 6
        %v845 = vld [vmem:[%s844] ss:$8 sm:$0x3]
        %v847 = vlaneseq
        %v848 = vshrl.u32 %v847, 7
        %v849 = vsub.s32 0, %v848
        %v850 = vrot.slane %v845, %v849
        %v851 = vlaneseq
        %v852 = vshrl.u32 %v851, 7
        %v853 = vsub.s32 1, %v852
        %v854 = vrot.slane %v845, %v853
        %v857 = vmul.f32 %v842, %v850
        %v858 = vmul.f32 %v843, %v854
        %s859 = scalar_lea.vmem %s1, 48
        %v860 = vld [vmem:[%s859] sm:$0xff]
        %v862 = vsel %vm282, %v860, 0
        %864 = vmatprep.subr.mxu0 %v858
        %865 = vmatpush1.msra.mxu0 %v857
        %866 = vmatprep.subr.mxu0 0.0
        %867 = vmatpush1.msra.mxu0 0.0
        %868 = vmatprep.subr.mxu0 0.0
        %869 = vmatpush1.msra.mxu0 0.0
        %870 = vmatprep.subr.mxu0 0.0
        %871 = vmatpush1.msra.mxu0 0.0
        %872 = vmatprep.subr.mxu0 0.0
        %873 = vmatpush1.msra.mxu0 0.0
        %874 = vmatprep.subr.mxu0 0.0
        %875 = vmatpush1.msra.mxu0 0.0
        %876 = vmatprep.subr.mxu0 0.0
        %877 = vmatpush1.msra.mxu0 0.0
        %878 = vmatprep.subr.mxu0 0.0
        %879 = vmatpush1.msra.mxu0 0.0
        %880 = vmatprep.subr.mxu0 0.0
        %881 = vmatpush1.msra.mxu0 0.0
        %882 = vmatprep.subr.mxu0 0.0
        %883 = vmatpush1.msra.mxu0 0.0
        %884 = vmatprep.subr.mxu0 0.0
        %885 = vmatpush1.msra.mxu0 0.0
        %886 = vmatprep.subr.mxu0 0.0
        %887 = vmatpush1.msra.mxu0 0.0
        %888 = vmatprep.subr.mxu0 0.0
        %889 = vmatpush1.msra.mxu0 0.0
        %890 = vmatprep.subr.mxu0 0.0
        %891 = vmatpush1.msra.mxu0 0.0
        %892 = vmatprep.subr.mxu0 0.0
        %893 = vmatpush1.msra.mxu0 0.0
        %894 = vmatprep.subr.mxu0 0.0
        %895 = vmatpush1.msra.mxu0 0.0
        %896 = vmatprep.subr.mxu0 0.0
        %897 = vmatpush1.msra.mxu0 0.0
        %898 = vmatprep.subr.mxu0 0.0
        %899 = vmatpush1.msra.mxu0 0.0
        %900 = vmatprep.subr.mxu0 0.0
        %901 = vmatpush1.msra.mxu0 0.0
        %902 = vmatprep.subr.mxu0 0.0
        %903 = vmatpush1.msra.mxu0 0.0
        %904 = vmatprep.subr.mxu0 0.0
        %905 = vmatpush1.msra.mxu0 0.0
        %906 = vmatprep.subr.mxu0 0.0
        %907 = vmatpush1.msra.mxu0 0.0
        %908 = vmatprep.subr.mxu0 0.0
        %909 = vmatpush1.msra.mxu0 0.0
        %910 = vmatprep.subr.mxu0 0.0
        %911 = vmatpush1.msra.mxu0 0.0
        %912 = vmatprep.subr.mxu0 0.0
        %913 = vmatpush1.msra.mxu0 0.0
        %914 = vmatprep.subr.mxu0 0.0
        %915 = vmatpush1.msra.mxu0 0.0
        %916 = vmatprep.subr.mxu0 0.0
        %917 = vmatpush1.msra.mxu0 0.0
        %918 = vmatprep.subr.mxu0 0.0
        %919 = vmatpush1.msra.mxu0 0.0
        %920 = vmatprep.subr.mxu0 0.0
        %921 = vmatpush1.msra.mxu0 0.0
        %922 = vmatprep.subr.mxu0 0.0
        %923 = vmatpush1.msra.mxu0 0.0
        %924 = vmatprep.subr.mxu0 0.0
        %925 = vmatpush1.msra.mxu0 0.0
        %926 = vmatprep.subr.mxu0 0.0
        %927 = vmatpush1.msra.mxu0 0.0
        %928 = vmatprep.mubr.f32.mxu0 0.0
        %929 = vmatmul.mubr.f32.gmra.mrb[0].mxu0 %v862
        %v930 = vpop.f32.mrb[0].mxu0
        %v931 = vadd.f32 0.0, %v930
        %v932 = vpop.f32.mrb[0].mxu0
        %v933 = vadd.f32 0.0, %v932
        %934 = vdwg.mxu0
        %v935 = vadd.f32 %v835, %v931
        %v936 = vadd.f32 %v836, %v933
        %937 = vrot.lane.b32.xlu0 %v250, 112
        %v938 = vpop.permute.xlu0 %937
        %939 = vrot.lane.b32.xlu0 %v251, 112
        %v940 = vpop.permute.xlu0 %939
        %vm941 = vcmp.lt.s32.totalorder %v263, 112
        %v942 = vsel %vm941, %v938, %v940
        %v943 = vsel %vm941, %v940, %v938
        %s944 = scalar_lea.vmem %s0, 7
        %v945 = vld [vmem:[%s944] ss:$8 sm:$0x3]
        %v947 = vlaneseq
        %v948 = vshrl.u32 %v947, 7
        %v949 = vsub.s32 0, %v948
        %v950 = vrot.slane %v945, %v949
        %v951 = vlaneseq
        %v952 = vshrl.u32 %v951, 7
        %v953 = vsub.s32 1, %v952
        %v954 = vrot.slane %v945, %v953
        %v957 = vmul.f32 %v942, %v950
        %v958 = vmul.f32 %v943, %v954
        %s959 = scalar_lea.vmem %s1, 56
        %v960 = vld [vmem:[%s959] sm:$0xff]
        %v962 = vsel %vm282, %v960, 0
        %964 = vmatprep.subr.mxu0 %v958
        %965 = vmatpush1.msra.mxu0 %v957
        %966 = vmatprep.subr.mxu0 0.0
        %967 = vmatpush1.msra.mxu0 0.0
        %968 = vmatprep.subr.mxu0 0.0
        %969 = vmatpush1.msra.mxu0 0.0
        %970 = vmatprep.subr.mxu0 0.0
        %971 = vmatpush1.msra.mxu0 0.0
        %972 = vmatprep.subr.mxu0 0.0
        %973 = vmatpush1.msra.mxu0 0.0
        %974 = vmatprep.subr.mxu0 0.0
        %975 = vmatpush1.msra.mxu0 0.0
        %976 = vmatprep.subr.mxu0 0.0
        %977 = vmatpush1.msra.mxu0 0.0
        %978 = vmatprep.subr.mxu0 0.0
        %979 = vmatpush1.msra.mxu0 0.0
        %980 = vmatprep.subr.mxu0 0.0
        %981 = vmatpush1.msra.mxu0 0.0
        %982 = vmatprep.subr.mxu0 0.0
        %983 = vmatpush1.msra.mxu0 0.0
        %984 = vmatprep.subr.mxu0 0.0
        %985 = vmatpush1.msra.mxu0 0.0
        %986 = vmatprep.subr.mxu0 0.0
        %987 = vmatpush1.msra.mxu0 0.0
        %988 = vmatprep.subr.mxu0 0.0
        %989 = vmatpush1.msra.mxu0 0.0
        %990 = vmatprep.subr.mxu0 0.0
        %991 = vmatpush1.msra.mxu0 0.0
        %992 = vmatprep.subr.mxu0 0.0
        %993 = vmatpush1.msra.mxu0 0.0
        %994 = vmatprep.subr.mxu0 0.0
        %995 = vmatpush1.msra.mxu0 0.0
        %996 = vmatprep.subr.mxu0 0.0
        %997 = vmatpush1.msra.mxu0 0.0
        %998 = vmatprep.subr.mxu0 0.0
        %999 = vmatpush1.msra.mxu0 0.0
        %1000 = vmatprep.subr.mxu0 0.0
        %1001 = vmatpush1.msra.mxu0 0.0
        %1002 = vmatprep.subr.mxu0 0.0
        %1003 = vmatpush1.msra.mxu0 0.0
        %1004 = vmatprep.subr.mxu0 0.0
        %1005 = vmatpush1.msra.mxu0 0.0
        %1006 = vmatprep.subr.mxu0 0.0
        %1007 = vmatpush1.msra.mxu0 0.0
        %1008 = vmatprep.subr.mxu0 0.0
        %1009 = vmatpush1.msra.mxu0 0.0
        %1010 = vmatprep.subr.mxu0 0.0
        %1011 = vmatpush1.msra.mxu0 0.0
        %1012 = vmatprep.subr.mxu0 0.0
        %1013 = vmatpush1.msra.mxu0 0.0
        %1014 = vmatprep.subr.mxu0 0.0
        %1015 = vmatpush1.msra.mxu0 0.0
        %1016 = vmatprep.subr.mxu0 0.0
        %1017 = vmatpush1.msra.mxu0 0.0
        %1018 = vmatprep.subr.mxu0 0.0
        %1019 = vmatpush1.msra.mxu0 0.0
        %1020 = vmatprep.subr.mxu0 0.0
        %1021 = vmatpush1.msra.mxu0 0.0
        %1022 = vmatprep.subr.mxu0 0.0
        %1023 = vmatpush1.msra.mxu0 0.0
        %1024 = vmatprep.subr.mxu0 0.0
        %1025 = vmatpush1.msra.mxu0 0.0
        %1026 = vmatprep.subr.mxu0 0.0
        %1027 = vmatpush1.msra.mxu0 0.0
        %1028 = vmatprep.mubr.f32.mxu0 0.0
        %1029 = vmatmul.mubr.f32.gmra.mrb[0].mxu0 %v962
        %v1030 = vpop.f32.mrb[0].mxu0
        %v1031 = vadd.f32 0.0, %v1030
        %v1032 = vpop.f32.mrb[0].mxu0
        %v1033 = vadd.f32 0.0, %v1032
        %1034 = vdwg.mxu0
        %v1035 = vadd.f32 %v935, %v1031
        %v1036 = vadd.f32 %v936, %v1033
        %1037 = vrot.lane.b32.xlu0 %v250, 111
        %v1038 = vpop.permute.xlu0 %1037
        %1039 = vrot.lane.b32.xlu0 %v251, 111
        %v1040 = vpop.permute.xlu0 %1039
        %vm1041 = vcmp.lt.s32.totalorder %v263, 111
        %v1042 = vsel %vm1041, %v1038, %v1040
        %v1043 = vsel %vm1041, %v1040, %v1038
        %s1044 = scalar_lea.vmem %s0, 16
        %v1045 = vld [vmem:[%s1044] ss:$8 sm:$0x3]
        %v1047 = vlaneseq
        %v1048 = vshrl.u32 %v1047, 7
        %v1049 = vsub.s32 0, %v1048
        %v1050 = vrot.slane %v1045, %v1049
        %v1051 = vlaneseq
        %v1052 = vshrl.u32 %v1051, 7
        %v1053 = vsub.s32 1, %v1052
        %v1054 = vrot.slane %v1045, %v1053
        %v1057 = vmul.f32 %v1042, %v1050
        %v1058 = vmul.f32 %v1043, %v1054
        %s1059 = scalar_lea.vmem %s1, 64
        %v1060 = vld [vmem:[%s1059] sm:$0xff]
        %v1062 = vsel %vm282, %v1060, 0
        %1064 = vmatprep.subr.mxu0 %v1058
        %1065 = vmatpush1.msra.mxu0 %v1057
        %1066 = vmatprep.subr.mxu0 0.0
        %1067 = vmatpush1.msra.mxu0 0.0
        %1068 = vmatprep.subr.mxu0 0.0
        %1069 = vmatpush1.msra.mxu0 0.0
        %1070 = vmatprep.subr.mxu0 0.0
        %1071 = vmatpush1.msra.mxu0 0.0
        %1072 = vmatprep.subr.mxu0 0.0
        %1073 = vmatpush1.msra.mxu0 0.0
        %1074 = vmatprep.subr.mxu0 0.0
        %1075 = vmatpush1.msra.mxu0 0.0
        %1076 = vmatprep.subr.mxu0 0.0
        %1077 = vmatpush1.msra.mxu0 0.0
        %1078 = vmatprep.subr.mxu0 0.0
        %1079 = vmatpush1.msra.mxu0 0.0
        %1080 = vmatprep.subr.mxu0 0.0
        %1081 = vmatpush1.msra.mxu0 0.0
        %1082 = vmatprep.subr.mxu0 0.0
        %1083 = vmatpush1.msra.mxu0 0.0
        %1084 = vmatprep.subr.mxu0 0.0
        %1085 = vmatpush1.msra.mxu0 0.0
        %1086 = vmatprep.subr.mxu0 0.0
        %1087 = vmatpush1.msra.mxu0 0.0
        %1088 = vmatprep.subr.mxu0 0.0
        %1089 = vmatpush1.msra.mxu0 0.0
        %1090 = vmatprep.subr.mxu0 0.0
        %1091 = vmatpush1.msra.mxu0 0.0
        %1092 = vmatprep.subr.mxu0 0.0
        %1093 = vmatpush1.msra.mxu0 0.0
        %1094 = vmatprep.subr.mxu0 0.0
        %1095 = vmatpush1.msra.mxu0 0.0
        %1096 = vmatprep.subr.mxu0 0.0
        %1097 = vmatpush1.msra.mxu0 0.0
        %1098 = vmatprep.subr.mxu0 0.0
        %1099 = vmatpush1.msra.mxu0 0.0
        %1100 = vmatprep.subr.mxu0 0.0
        %1101 = vmatpush1.msra.mxu0 0.0
        %1102 = vmatprep.subr.mxu0 0.0
        %1103 = vmatpush1.msra.mxu0 0.0
        %1104 = vmatprep.subr.mxu0 0.0
        %1105 = vmatpush1.msra.mxu0 0.0
        %1106 = vmatprep.subr.mxu0 0.0
        %1107 = vmatpush1.msra.mxu0 0.0
        %1108 = vmatprep.subr.mxu0 0.0
        %1109 = vmatpush1.msra.mxu0 0.0
        %1110 = vmatprep.subr.mxu0 0.0
        %1111 = vmatpush1.msra.mxu0 0.0
        %1112 = vmatprep.subr.mxu0 0.0
        %1113 = vmatpush1.msra.mxu0 0.0
        %1114 = vmatprep.subr.mxu0 0.0
        %1115 = vmatpush1.msra.mxu0 0.0
        %1116 = vmatprep.subr.mxu0 0.0
        %1117 = vmatpush1.msra.mxu0 0.0
        %1118 = vmatprep.subr.mxu0 0.0
        %1119 = vmatpush1.msra.mxu0 0.0
        %1120 = vmatprep.subr.mxu0 0.0
        %1121 = vmatpush1.msra.mxu0 0.0
        %1122 = vmatprep.subr.mxu0 0.0
        %1123 = vmatpush1.msra.mxu0 0.0
        %1124 = vmatprep.subr.mxu0 0.0
        %1125 = vmatpush1.msra.mxu0 0.0
        %1126 = vmatprep.subr.mxu0 0.0
        %1127 = vmatpush1.msra.mxu0 0.0
        %1128 = vmatprep.mubr.f32.mxu0 0.0
        %1129 = vmatmul.mubr.f32.gmra.mrb[0].mxu0 %v1062
        %v1130 = vpop.f32.mrb[0].mxu0
        %v1131 = vadd.f32 0.0, %v1130
        %v1132 = vpop.f32.mrb[0].mxu0
        %v1133 = vadd.f32 0.0, %v1132
        %1134 = vdwg.mxu0
        %v1135 = vadd.f32 %v1035, %v1131
        %v1136 = vadd.f32 %v1036, %v1133
        %v1137 = vmax.f32 %v1135, 0.0
        %v1138 = vmax.f32 %v1136, 0.0
        %v1139 = vld [vmem:[%s4] sm:$0xff]
        %1141 = vset.pattern.permute.xlu0 0
        %1142 = vperm.xlu0 %1141, %v1139
        %v1143 = vpop.permute.xlu0 %1142
        %1145 = vrot.lane.b32.xlu0 %v1137, 17
        %v1146 = vpop.permute.xlu0 %1145
        %1147 = vrot.lane.b32.xlu0 %v1138, 17
        %v1148 = vpop.permute.xlu0 %1147
        %v1149 = vsel %vm264, %v1146, %v1148
        %v1150 = vsel %vm264, %v1148, %v1146
        %v1151 = vmul.f32 %v1150, %v272
        %v1152 = vmul.f32 %v1149, %v276
        %v1153 = vld [vmem:[%s3] sm:$0xff]
        %v1155 = vsel %vm282, %v1153, 0
        %1157 = vmatprep.subr.mxu0 %v1152
        %1158 = vmatpush1.msra.mxu0 %v1151
        %1159 = vmatprep.subr.mxu0 0.0
        %1160 = vmatpush1.msra.mxu0 0.0
        %1161 = vmatprep.subr.mxu0 0.0
        %1162 = vmatpush1.msra.mxu0 0.0
        %1163 = vmatprep.subr.mxu0 0.0
        %1164 = vmatpush1.msra.mxu0 0.0
        %1165 = vmatprep.subr.mxu0 0.0
        %1166 = vmatpush1.msra.mxu0 0.0
        %1167 = vmatprep.subr.mxu0 0.0
        %1168 = vmatpush1.msra.mxu0 0.0
        %1169 = vmatprep.subr.mxu0 0.0
        %1170 = vmatpush1.msra.mxu0 0.0
        %1171 = vmatprep.subr.mxu0 0.0
        %1172 = vmatpush1.msra.mxu0 0.0
        %1173 = vmatprep.subr.mxu0 0.0
        %1174 = vmatpush1.msra.mxu0 0.0
        %1175 = vmatprep.subr.mxu0 0.0
        %1176 = vmatpush1.msra.mxu0 0.0
        %1177 = vmatprep.subr.mxu0 0.0
        %1178 = vmatpush1.msra.mxu0 0.0
        %1179 = vmatprep.subr.mxu0 0.0
        %1180 = vmatpush1.msra.mxu0 0.0
        %1181 = vmatprep.subr.mxu0 0.0
        %1182 = vmatpush1.msra.mxu0 0.0
        %1183 = vmatprep.subr.mxu0 0.0
        %1184 = vmatpush1.msra.mxu0 0.0
        %1185 = vmatprep.subr.mxu0 0.0
        %1186 = vmatpush1.msra.mxu0 0.0
        %1187 = vmatprep.subr.mxu0 0.0
        %1188 = vmatpush1.msra.mxu0 0.0
        %1189 = vmatprep.subr.mxu0 0.0
        %1190 = vmatpush1.msra.mxu0 0.0
        %1191 = vmatprep.subr.mxu0 0.0
        %1192 = vmatpush1.msra.mxu0 0.0
        %1193 = vmatprep.subr.mxu0 0.0
        %1194 = vmatpush1.msra.mxu0 0.0
        %1195 = vmatprep.subr.mxu0 0.0
        %1196 = vmatpush1.msra.mxu0 0.0
        %1197 = vmatprep.subr.mxu0 0.0
        %1198 = vmatpush1.msra.mxu0 0.0
        %1199 = vmatprep.subr.mxu0 0.0
        %1200 = vmatpush1.msra.mxu0 0.0
        %1201 = vmatprep.subr.mxu0 0.0
        %1202 = vmatpush1.msra.mxu0 0.0
        %1203 = vmatprep.subr.mxu0 0.0
        %1204 = vmatpush1.msra.mxu0 0.0
        %1205 = vmatprep.subr.mxu0 0.0
        %1206 = vmatpush1.msra.mxu0 0.0
        %1207 = vmatprep.subr.mxu0 0.0
        %1208 = vmatpush1.msra.mxu0 0.0
        %1209 = vmatprep.subr.mxu0 0.0
        %1210 = vmatpush1.msra.mxu0 0.0
        %1211 = vmatprep.subr.mxu0 0.0
        %1212 = vmatpush1.msra.mxu0 0.0
        %1213 = vmatprep.subr.mxu0 0.0
        %1214 = vmatpush1.msra.mxu0 0.0
        %1215 = vmatprep.subr.mxu0 0.0
        %1216 = vmatpush1.msra.mxu0 0.0
        %1217 = vmatprep.subr.mxu0 0.0
        %1218 = vmatpush1.msra.mxu0 0.0
        %1219 = vmatprep.subr.mxu0 0.0
        %1220 = vmatpush1.msra.mxu0 0.0
        %1221 = vmatprep.mubr.f32.mxu0 0.0
        %1222 = vmatmul.mubr.f32.gmra.mrb[0].mxu0 %v1155
        %v1223 = vpop.f32.mrb[0].mxu0
        %v1224 = vadd.f32 0.0, %v1223
        %v1225 = vpop.f32.mrb[0].mxu0
        %v1226 = vadd.f32 0.0, %v1225
        %1227 = vdwg.mxu0
        %v1228 = vadd.f32 %v1143, %v1224
        %v1229 = vadd.f32 %v1143, %v1226
        %1230 = vrot.lane.b32.xlu0 %v1137, 16
        %v1231 = vpop.permute.xlu0 %1230
        %1232 = vrot.lane.b32.xlu0 %v1138, 16
        %v1233 = vpop.permute.xlu0 %1232
        %v1234 = vsel %vm363, %v1231, %v1233
        %v1235 = vsel %vm363, %v1233, %v1231
        %v1236 = vmul.f32 %v1235, %v372
        %v1237 = vmul.f32 %v1234, %v376
        %s1238 = scalar_lea.vmem %s3, 8
        %v1239 = vld [vmem:[%s1238] sm:$0xff]
        %v1241 = vsel %vm282, %v1239, 0
        %1243 = vmatprep.subr.mxu0 %v1237
        %1244 = vmatpush1.msra.mxu0 %v1236
        %1245 = vmatprep.subr.mxu0 0.0
        %1246 = vmatpush1.msra.mxu0 0.0
        %1247 = vmatprep.subr.mxu0 0.0
        %1248 = vmatpush1.msra.mxu0 0.0
        %1249 = vmatprep.subr.mxu0 0.0
        %1250 = vmatpush1.msra.mxu0 0.0
        %1251 = vmatprep.subr.mxu0 0.0
        %1252 = vmatpush1.msra.mxu0 0.0
        %1253 = vmatprep.subr.mxu0 0.0
        %1254 = vmatpush1.msra.mxu0 0.0
        %1255 = vmatprep.subr.mxu0 0.0
        %1256 = vmatpush1.msra.mxu0 0.0
        %1257 = vmatprep.subr.mxu0 0.0
        %1258 = vmatpush1.msra.mxu0 0.0
        %1259 = vmatprep.subr.mxu0 0.0
        %1260 = vmatpush1.msra.mxu0 0.0
        %1261 = vmatprep.subr.mxu0 0.0
        %1262 = vmatpush1.msra.mxu0 0.0
        %1263 = vmatprep.subr.mxu0 0.0
        %1264 = vmatpush1.msra.mxu0 0.0
        %1265 = vmatprep.subr.mxu0 0.0
        %1266 = vmatpush1.msra.mxu0 0.0
        %1267 = vmatprep.subr.mxu0 0.0
        %1268 = vmatpush1.msra.mxu0 0.0
        %1269 = vmatprep.subr.mxu0 0.0
        %1270 = vmatpush1.msra.mxu0 0.0
        %1271 = vmatprep.subr.mxu0 0.0
        %1272 = vmatpush1.msra.mxu0 0.0
        %1273 = vmatprep.subr.mxu0 0.0
        %1274 = vmatpush1.msra.mxu0 0.0
        %1275 = vmatprep.subr.mxu0 0.0
        %1276 = vmatpush1.msra.mxu0 0.0
        %1277 = vmatprep.subr.mxu0 0.0
        %1278 = vmatpush1.msra.mxu0 0.0
        %1279 = vmatprep.subr.mxu0 0.0
        %1280 = vmatpush1.msra.mxu0 0.0
        %1281 = vmatprep.subr.mxu0 0.0
        %1282 = vmatpush1.msra.mxu0 0.0
        %1283 = vmatprep.subr.mxu0 0.0
        %1284 = vmatpush1.msra.mxu0 0.0
        %1285 = vmatprep.subr.mxu0 0.0
        %1286 = vmatpush1.msra.mxu0 0.0
        %1287 = vmatprep.subr.mxu0 0.0
        %1288 = vmatpush1.msra.mxu0 0.0
        %1289 = vmatprep.subr.mxu0 0.0
        %1290 = vmatpush1.msra.mxu0 0.0
        %1291 = vmatprep.subr.mxu0 0.0
        %1292 = vmatpush1.msra.mxu0 0.0
        %1293 = vmatprep.subr.mxu0 0.0
        %1294 = vmatpush1.msra.mxu0 0.0
        %1295 = vmatprep.subr.mxu0 0.0
        %1296 = vmatpush1.msra.mxu0 0.0
        %1297 = vmatprep.subr.mxu0 0.0
        %1298 = vmatpush1.msra.mxu0 0.0
        %1299 = vmatprep.subr.mxu0 0.0
        %1300 = vmatpush1.msra.mxu0 0.0
        %1301 = vmatprep.subr.mxu0 0.0
        %1302 = vmatpush1.msra.mxu0 0.0
        %1303 = vmatprep.subr.mxu0 0.0
        %1304 = vmatpush1.msra.mxu0 0.0
        %1305 = vmatprep.subr.mxu0 0.0
        %1306 = vmatpush1.msra.mxu0 0.0
        %1307 = vmatprep.mubr.f32.mxu0 0.0
        %1308 = vmatmul.mubr.f32.gmra.mrb[0].mxu0 %v1241
        %v1309 = vpop.f32.mrb[0].mxu0
        %v1310 = vadd.f32 0.0, %v1309
        %v1311 = vpop.f32.mrb[0].mxu0
        %v1312 = vadd.f32 0.0, %v1311
        %1313 = vdwg.mxu0
        %v1314 = vadd.f32 %v1228, %v1310
        %v1315 = vadd.f32 %v1229, %v1312
        %1316 = vrot.lane.b32.xlu0 %v1137, 15
        %v1317 = vpop.permute.xlu0 %1316
        %1318 = vrot.lane.b32.xlu0 %v1138, 15
        %v1319 = vpop.permute.xlu0 %1318
        %v1320 = vsel %vm463, %v1317, %v1319
        %v1321 = vsel %vm463, %v1319, %v1317
        %v1322 = vmul.f32 %v1321, %v472
        %v1323 = vmul.f32 %v1320, %v476
        %s1324 = scalar_lea.vmem %s3, 16
        %v1325 = vld [vmem:[%s1324] sm:$0xff]
        %v1327 = vsel %vm282, %v1325, 0
        %1329 = vmatprep.subr.mxu0 %v1323
        %1330 = vmatpush1.msra.mxu0 %v1322
        %1331 = vmatprep.subr.mxu0 0.0
        %1332 = vmatpush1.msra.mxu0 0.0
        %1333 = vmatprep.subr.mxu0 0.0
        %1334 = vmatpush1.msra.mxu0 0.0
        %1335 = vmatprep.subr.mxu0 0.0
        %1336 = vmatpush1.msra.mxu0 0.0
        %1337 = vmatprep.subr.mxu0 0.0
        %1338 = vmatpush1.msra.mxu0 0.0
        %1339 = vmatprep.subr.mxu0 0.0
        %1340 = vmatpush1.msra.mxu0 0.0
        %1341 = vmatprep.subr.mxu0 0.0
        %1342 = vmatpush1.msra.mxu0 0.0
        %1343 = vmatprep.subr.mxu0 0.0
        %1344 = vmatpush1.msra.mxu0 0.0
        %1345 = vmatprep.subr.mxu0 0.0
        %1346 = vmatpush1.msra.mxu0 0.0
        %1347 = vmatprep.subr.mxu0 0.0
        %1348 = vmatpush1.msra.mxu0 0.0
        %1349 = vmatprep.subr.mxu0 0.0
        %1350 = vmatpush1.msra.mxu0 0.0
        %1351 = vmatprep.subr.mxu0 0.0
        %1352 = vmatpush1.msra.mxu0 0.0
        %1353 = vmatprep.subr.mxu0 0.0
        %1354 = vmatpush1.msra.mxu0 0.0
        %1355 = vmatprep.subr.mxu0 0.0
        %1356 = vmatpush1.msra.mxu0 0.0
        %1357 = vmatprep.subr.mxu0 0.0
        %1358 = vmatpush1.msra.mxu0 0.0
        %1359 = vmatprep.subr.mxu0 0.0
        %1360 = vmatpush1.msra.mxu0 0.0
        %1361 = vmatprep.subr.mxu0 0.0
        %1362 = vmatpush1.msra.mxu0 0.0
        %1363 = vmatprep.subr.mxu0 0.0
        %1364 = vmatpush1.msra.mxu0 0.0
        %1365 = vmatprep.subr.mxu0 0.0
        %1366 = vmatpush1.msra.mxu0 0.0
        %1367 = vmatprep.subr.mxu0 0.0
        %1368 = vmatpush1.msra.mxu0 0.0
        %1369 = vmatprep.subr.mxu0 0.0
        %1370 = vmatpush1.msra.mxu0 0.0
        %1371 = vmatprep.subr.mxu0 0.0
        %1372 = vmatpush1.msra.mxu0 0.0
        %1373 = vmatprep.subr.mxu0 0.0
        %1374 = vmatpush1.msra.mxu0 0.0
        %1375 = vmatprep.subr.mxu0 0.0
        %1376 = vmatpush1.msra.mxu0 0.0
        %1377 = vmatprep.subr.mxu0 0.0
        %1378 = vmatpush1.msra.mxu0 0.0
        %1379 = vmatprep.subr.mxu0 0.0
        %1380 = vmatpush1.msra.mxu0 0.0
        %1381 = vmatprep.subr.mxu0 0.0
        %1382 = vmatpush1.msra.mxu0 0.0
        %1383 = vmatprep.subr.mxu0 0.0
        %1384 = vmatpush1.msra.mxu0 0.0
        %1385 = vmatprep.subr.mxu0 0.0
        %1386 = vmatpush1.msra.mxu0 0.0
        %1387 = vmatprep.subr.mxu0 0.0
        %1388 = vmatpush1.msra.mxu0 0.0
        %1389 = vmatprep.subr.mxu0 0.0
        %1390 = vmatpush1.msra.mxu0 0.0
        %1391 = vmatprep.subr.mxu0 0.0
        %1392 = vmatpush1.msra.mxu0 0.0
        %1393 = vmatprep.mubr.f32.mxu0 0.0
        %1394 = vmatmul.mubr.f32.gmra.mrb[0].mxu0 %v1327
        %v1395 = vpop.f32.mrb[0].mxu0
        %v1396 = vadd.f32 0.0, %v1395
        %v1397 = vpop.f32.mrb[0].mxu0
        %v1398 = vadd.f32 0.0, %v1397
        %1399 = vdwg.mxu0
        %v1400 = vadd.f32 %v1314, %v1396
        %v1401 = vadd.f32 %v1315, %v1398
        %1402 = vrot.lane.b32.xlu0 %v1137, 1
        %v1403 = vpop.permute.xlu0 %1402
        %1404 = vrot.lane.b32.xlu0 %v1138, 1
        %v1405 = vpop.permute.xlu0 %1404
        %v1406 = vsel %vm563, %v1403, %v1405
        %v1407 = vsel %vm563, %v1405, %v1403
        %v1408 = vmul.f32 %v1407, %v572
        %v1409 = vmul.f32 %v1406, %v576
        %s1410 = scalar_lea.vmem %s3, 24
        %v1411 = vld [vmem:[%s1410] sm:$0xff]
        %v1413 = vsel %vm282, %v1411, 0
        %1415 = vmatprep.subr.mxu0 %v1409
        %1416 = vmatpush1.msra.mxu0 %v1408
        %1417 = vmatprep.subr.mxu0 0.0
        %1418 = vmatpush1.msra.mxu0 0.0
        %1419 = vmatprep.subr.mxu0 0.0
        %1420 = vmatpush1.msra.mxu0 0.0
        %1421 = vmatprep.subr.mxu0 0.0
        %1422 = vmatpush1.msra.mxu0 0.0
        %1423 = vmatprep.subr.mxu0 0.0
        %1424 = vmatpush1.msra.mxu0 0.0
        %1425 = vmatprep.subr.mxu0 0.0
        %1426 = vmatpush1.msra.mxu0 0.0
        %1427 = vmatprep.subr.mxu0 0.0
        %1428 = vmatpush1.msra.mxu0 0.0
        %1429 = vmatprep.subr.mxu0 0.0
        %1430 = vmatpush1.msra.mxu0 0.0
        %1431 = vmatprep.subr.mxu0 0.0
        %1432 = vmatpush1.msra.mxu0 0.0
        %1433 = vmatprep.subr.mxu0 0.0
        %1434 = vmatpush1.msra.mxu0 0.0
        %1435 = vmatprep.subr.mxu0 0.0
        %1436 = vmatpush1.msra.mxu0 0.0
        %1437 = vmatprep.subr.mxu0 0.0
        %1438 = vmatpush1.msra.mxu0 0.0
        %1439 = vmatprep.subr.mxu0 0.0
        %1440 = vmatpush1.msra.mxu0 0.0
        %1441 = vmatprep.subr.mxu0 0.0
        %1442 = vmatpush1.msra.mxu0 0.0
        %1443 = vmatprep.subr.mxu0 0.0
        %1444 = vmatpush1.msra.mxu0 0.0
        %1445 = vmatprep.subr.mxu0 0.0
        %1446 = vmatpush1.msra.mxu0 0.0
        %1447 = vmatprep.subr.mxu0 0.0
        %1448 = vmatpush1.msra.mxu0 0.0
        %1449 = vmatprep.subr.mxu0 0.0
        %1450 = vmatpush1.msra.mxu0 0.0
        %1451 = vmatprep.subr.mxu0 0.0
        %1452 = vmatpush1.msra.mxu0 0.0
        %1453 = vmatprep.subr.mxu0 0.0
        %1454 = vmatpush1.msra.mxu0 0.0
        %1455 = vmatprep.subr.mxu0 0.0
        %1456 = vmatpush1.msra.mxu0 0.0
        %1457 = vmatprep.subr.mxu0 0.0
        %1458 = vmatpush1.msra.mxu0 0.0
        %1459 = vmatprep.subr.mxu0 0.0
        %1460 = vmatpush1.msra.mxu0 0.0
        %1461 = vmatprep.subr.mxu0 0.0
        %1462 = vmatpush1.msra.mxu0 0.0
        %1463 = vmatprep.subr.mxu0 0.0
        %1464 = vmatpush1.msra.mxu0 0.0
        %1465 = vmatprep.subr.mxu0 0.0
        %1466 = vmatpush1.msra.mxu0 0.0
        %1467 = vmatprep.subr.mxu0 0.0
        %1468 = vmatpush1.msra.mxu0 0.0
        %1469 = vmatprep.subr.mxu0 0.0
        %1470 = vmatpush1.msra.mxu0 0.0
        %1471 = vmatprep.subr.mxu0 0.0
        %1472 = vmatpush1.msra.mxu0 0.0
        %1473 = vmatprep.subr.mxu0 0.0
        %1474 = vmatpush1.msra.mxu0 0.0
        %1475 = vmatprep.subr.mxu0 0.0
        %1476 = vmatpush1.msra.mxu0 0.0
        %1477 = vmatprep.subr.mxu0 0.0
        %1478 = vmatpush1.msra.mxu0 0.0
        %1479 = vmatprep.mubr.f32.mxu0 0.0
        %1480 = vmatmul.mubr.f32.gmra.mrb[0].mxu0 %v1413
        %v1481 = vpop.f32.mrb[0].mxu0
        %v1482 = vadd.f32 0.0, %v1481
        %v1483 = vpop.f32.mrb[0].mxu0
        %v1484 = vadd.f32 0.0, %v1483
        %1485 = vdwg.mxu0
        %v1486 = vadd.f32 %v1400, %v1482
        %v1487 = vadd.f32 %v1401, %v1484
        %s1488 = scalar_lea.vmem %s3, 32
        %v1489 = vld [vmem:[%s1488] sm:$0xff]
        %v1491 = vsel %vm282, %v1489, 0
        %1493 = vmatprep.subr.mxu0 %v1138
        %1494 = vmatpush1.msra.mxu0 %v1137
        %1495 = vmatprep.subr.mxu0 0.0
        %1496 = vmatpush1.msra.mxu0 0.0
        %1497 = vmatprep.subr.mxu0 0.0
        %1498 = vmatpush1.msra.mxu0 0.0
        %1499 = vmatprep.subr.mxu0 0.0
        %1500 = vmatpush1.msra.mxu0 0.0
        %1501 = vmatprep.subr.mxu0 0.0
        %1502 = vmatpush1.msra.mxu0 0.0
        %1503 = vmatprep.subr.mxu0 0.0
        %1504 = vmatpush1.msra.mxu0 0.0
        %1505 = vmatprep.subr.mxu0 0.0
        %1506 = vmatpush1.msra.mxu0 0.0
        %1507 = vmatprep.subr.mxu0 0.0
        %1508 = vmatpush1.msra.mxu0 0.0
        %1509 = vmatprep.subr.mxu0 0.0
        %1510 = vmatpush1.msra.mxu0 0.0
        %1511 = vmatprep.subr.mxu0 0.0
        %1512 = vmatpush1.msra.mxu0 0.0
        %1513 = vmatprep.subr.mxu0 0.0
        %1514 = vmatpush1.msra.mxu0 0.0
        %1515 = vmatprep.subr.mxu0 0.0
        %1516 = vmatpush1.msra.mxu0 0.0
        %1517 = vmatprep.subr.mxu0 0.0
        %1518 = vmatpush1.msra.mxu0 0.0
        %1519 = vmatprep.subr.mxu0 0.0
        %1520 = vmatpush1.msra.mxu0 0.0
        %1521 = vmatprep.subr.mxu0 0.0
        %1522 = vmatpush1.msra.mxu0 0.0
        %1523 = vmatprep.subr.mxu0 0.0
        %1524 = vmatpush1.msra.mxu0 0.0
        %1525 = vmatprep.subr.mxu0 0.0
        %1526 = vmatpush1.msra.mxu0 0.0
        %1527 = vmatprep.subr.mxu0 0.0
        %1528 = vmatpush1.msra.mxu0 0.0
        %1529 = vmatprep.subr.mxu0 0.0
        %1530 = vmatpush1.msra.mxu0 0.0
        %1531 = vmatprep.subr.mxu0 0.0
        %1532 = vmatpush1.msra.mxu0 0.0
        %1533 = vmatprep.subr.mxu0 0.0
        %1534 = vmatpush1.msra.mxu0 0.0
        %1535 = vmatprep.subr.mxu0 0.0
        %1536 = vmatpush1.msra.mxu0 0.0
        %1537 = vmatprep.subr.mxu0 0.0
        %1538 = vmatpush1.msra.mxu0 0.0
        %1539 = vmatprep.subr.mxu0 0.0
        %1540 = vmatpush1.msra.mxu0 0.0
        %1541 = vmatprep.subr.mxu0 0.0
        %1542 = vmatpush1.msra.mxu0 0.0
        %1543 = vmatprep.subr.mxu0 0.0
        %1544 = vmatpush1.msra.mxu0 0.0
        %1545 = vmatprep.subr.mxu0 0.0
        %1546 = vmatpush1.msra.mxu0 0.0
        %1547 = vmatprep.subr.mxu0 0.0
        %1548 = vmatpush1.msra.mxu0 0.0
        %1549 = vmatprep.subr.mxu0 0.0
        %1550 = vmatpush1.msra.mxu0 0.0
        %1551 = vmatprep.subr.mxu0 0.0
        %1552 = vmatpush1.msra.mxu0 0.0
        %1553 = vmatprep.subr.mxu0 0.0
        %1554 = vmatpush1.msra.mxu0 0.0
        %1555 = vmatprep.subr.mxu0 0.0
        %1556 = vmatpush1.msra.mxu0 0.0
        %1557 = vmatprep.mubr.f32.mxu0 0.0
        %1558 = vmatmul.mubr.f32.gmra.mrb[0].mxu0 %v1491
        %v1559 = vpop.f32.mrb[0].mxu0
        %v1560 = vadd.f32 0.0, %v1559
        %v1561 = vpop.f32.mrb[0].mxu0
        %v1562 = vadd.f32 0.0, %v1561
        %1563 = vdwg.mxu0
        %v1564 = vadd.f32 %v1486, %v1560
        %v1565 = vadd.f32 %v1487, %v1562
        %1566 = vrot.lane.b32.xlu0 %v1137, 127
        %v1567 = vpop.permute.xlu0 %1566
        %1568 = vrot.lane.b32.xlu0 %v1138, 127
        %v1569 = vpop.permute.xlu0 %1568
        %v1570 = vsel %vm741, %v1567, %v1569
        %v1571 = vsel %vm741, %v1569, %v1567
        %v1572 = vmul.f32 %v1570, %v750
        %v1573 = vmul.f32 %v1571, %v754
        %s1574 = scalar_lea.vmem %s3, 40
        %v1575 = vld [vmem:[%s1574] sm:$0xff]
        %v1577 = vsel %vm282, %v1575, 0
        %1579 = vmatprep.subr.mxu0 %v1573
        %1580 = vmatpush1.msra.mxu0 %v1572
        %1581 = vmatprep.subr.mxu0 0.0
        %1582 = vmatpush1.msra.mxu0 0.0
        %1583 = vmatprep.subr.mxu0 0.0
        %1584 = vmatpush1.msra.mxu0 0.0
        %1585 = vmatprep.subr.mxu0 0.0
        %1586 = vmatpush1.msra.mxu0 0.0
        %1587 = vmatprep.subr.mxu0 0.0
        %1588 = vmatpush1.msra.mxu0 0.0
        %1589 = vmatprep.subr.mxu0 0.0
        %1590 = vmatpush1.msra.mxu0 0.0
        %1591 = vmatprep.subr.mxu0 0.0
        %1592 = vmatpush1.msra.mxu0 0.0
        %1593 = vmatprep.subr.mxu0 0.0
        %1594 = vmatpush1.msra.mxu0 0.0
        %1595 = vmatprep.subr.mxu0 0.0
        %1596 = vmatpush1.msra.mxu0 0.0
        %1597 = vmatprep.subr.mxu0 0.0
        %1598 = vmatpush1.msra.mxu0 0.0
        %1599 = vmatprep.subr.mxu0 0.0
        %1600 = vmatpush1.msra.mxu0 0.0
        %1601 = vmatprep.subr.mxu0 0.0
        %1602 = vmatpush1.msra.mxu0 0.0
        %1603 = vmatprep.subr.mxu0 0.0
        %1604 = vmatpush1.msra.mxu0 0.0
        %1605 = vmatprep.subr.mxu0 0.0
        %1606 = vmatpush1.msra.mxu0 0.0
        %1607 = vmatprep.subr.mxu0 0.0
        %1608 = vmatpush1.msra.mxu0 0.0
        %1609 = vmatprep.subr.mxu0 0.0
        %1610 = vmatpush1.msra.mxu0 0.0
        %1611 = vmatprep.subr.mxu0 0.0
        %1612 = vmatpush1.msra.mxu0 0.0
        %1613 = vmatprep.subr.mxu0 0.0
        %1614 = vmatpush1.msra.mxu0 0.0
        %1615 = vmatprep.subr.mxu0 0.0
        %1616 = vmatpush1.msra.mxu0 0.0
        %1617 = vmatprep.subr.mxu0 0.0
        %1618 = vmatpush1.msra.mxu0 0.0
        %1619 = vmatprep.subr.mxu0 0.0
        %1620 = vmatpush1.msra.mxu0 0.0
        %1621 = vmatprep.subr.mxu0 0.0
        %1622 = vmatpush1.msra.mxu0 0.0
        %1623 = vmatprep.subr.mxu0 0.0
        %1624 = vmatpush1.msra.mxu0 0.0
        %1625 = vmatprep.subr.mxu0 0.0
        %1626 = vmatpush1.msra.mxu0 0.0
        %1627 = vmatprep.subr.mxu0 0.0
        %1628 = vmatpush1.msra.mxu0 0.0
        %1629 = vmatprep.subr.mxu0 0.0
        %1630 = vmatpush1.msra.mxu0 0.0
        %1631 = vmatprep.subr.mxu0 0.0
        %1632 = vmatpush1.msra.mxu0 0.0
        %1633 = vmatprep.subr.mxu0 0.0
        %1634 = vmatpush1.msra.mxu0 0.0
        %1635 = vmatprep.subr.mxu0 0.0
        %1636 = vmatpush1.msra.mxu0 0.0
        %1637 = vmatprep.subr.mxu0 0.0
        %1638 = vmatpush1.msra.mxu0 0.0
        %1639 = vmatprep.subr.mxu0 0.0
        %1640 = vmatpush1.msra.mxu0 0.0
        %1641 = vmatprep.subr.mxu0 0.0
        %1642 = vmatpush1.msra.mxu0 0.0
        %1643 = vmatprep.mubr.f32.mxu0 0.0
        %1644 = vmatmul.mubr.f32.gmra.mrb[0].mxu0 %v1577
        %v1645 = vpop.f32.mrb[0].mxu0
        %v1646 = vadd.f32 0.0, %v1645
        %v1647 = vpop.f32.mrb[0].mxu0
        %v1648 = vadd.f32 0.0, %v1647
        %1649 = vdwg.mxu0
        %v1650 = vadd.f32 %v1564, %v1646
        %v1651 = vadd.f32 %v1565, %v1648
        %1652 = vrot.lane.b32.xlu0 %v1137, 113
        %v1653 = vpop.permute.xlu0 %1652
        %1654 = vrot.lane.b32.xlu0 %v1138, 113
        %v1655 = vpop.permute.xlu0 %1654
        %v1656 = vsel %vm841, %v1653, %v1655
        %v1657 = vsel %vm841, %v1655, %v1653
        %v1658 = vmul.f32 %v1656, %v850
        %v1659 = vmul.f32 %v1657, %v854
        %s1660 = scalar_lea.vmem %s3, 48
        %v1661 = vld [vmem:[%s1660] sm:$0xff]
        %v1663 = vsel %vm282, %v1661, 0
        %1665 = vmatprep.subr.mxu0 %v1659
        %1666 = vmatpush1.msra.mxu0 %v1658
        %1667 = vmatprep.subr.mxu0 0.0
        %1668 = vmatpush1.msra.mxu0 0.0
        %1669 = vmatprep.subr.mxu0 0.0
        %1670 = vmatpush1.msra.mxu0 0.0
        %1671 = vmatprep.subr.mxu0 0.0
        %1672 = vmatpush1.msra.mxu0 0.0
        %1673 = vmatprep.subr.mxu0 0.0
        %1674 = vmatpush1.msra.mxu0 0.0
        %1675 = vmatprep.subr.mxu0 0.0
        %1676 = vmatpush1.msra.mxu0 0.0
        %1677 = vmatprep.subr.mxu0 0.0
        %1678 = vmatpush1.msra.mxu0 0.0
        %1679 = vmatprep.subr.mxu0 0.0
        %1680 = vmatpush1.msra.mxu0 0.0
        %1681 = vmatprep.subr.mxu0 0.0
        %1682 = vmatpush1.msra.mxu0 0.0
        %1683 = vmatprep.subr.mxu0 0.0
        %1684 = vmatpush1.msra.mxu0 0.0
        %1685 = vmatprep.subr.mxu0 0.0
        %1686 = vmatpush1.msra.mxu0 0.0
        %1687 = vmatprep.subr.mxu0 0.0
        %1688 = vmatpush1.msra.mxu0 0.0
        %1689 = vmatprep.subr.mxu0 0.0
        %1690 = vmatpush1.msra.mxu0 0.0
        %1691 = vmatprep.subr.mxu0 0.0
        %1692 = vmatpush1.msra.mxu0 0.0
        %1693 = vmatprep.subr.mxu0 0.0
        %1694 = vmatpush1.msra.mxu0 0.0
        %1695 = vmatprep.subr.mxu0 0.0
        %1696 = vmatpush1.msra.mxu0 0.0
        %1697 = vmatprep.subr.mxu0 0.0
        %1698 = vmatpush1.msra.mxu0 0.0
        %1699 = vmatprep.subr.mxu0 0.0
        %1700 = vmatpush1.msra.mxu0 0.0
        %1701 = vmatprep.subr.mxu0 0.0
        %1702 = vmatpush1.msra.mxu0 0.0
        %1703 = vmatprep.subr.mxu0 0.0
        %1704 = vmatpush1.msra.mxu0 0.0
        %1705 = vmatprep.subr.mxu0 0.0
        %1706 = vmatpush1.msra.mxu0 0.0
        %1707 = vmatprep.subr.mxu0 0.0
        %1708 = vmatpush1.msra.mxu0 0.0
        %1709 = vmatprep.subr.mxu0 0.0
        %1710 = vmatpush1.msra.mxu0 0.0
        %1711 = vmatprep.subr.mxu0 0.0
        %1712 = vmatpush1.msra.mxu0 0.0
        %1713 = vmatprep.subr.mxu0 0.0
        %1714 = vmatpush1.msra.mxu0 0.0
        %1715 = vmatprep.subr.mxu0 0.0
        %1716 = vmatpush1.msra.mxu0 0.0
        %1717 = vmatprep.subr.mxu0 0.0
        %1718 = vmatpush1.msra.mxu0 0.0
        %1719 = vmatprep.subr.mxu0 0.0
        %1720 = vmatpush1.msra.mxu0 0.0
        %1721 = vmatprep.subr.mxu0 0.0
        %1722 = vmatpush1.msra.mxu0 0.0
        %1723 = vmatprep.subr.mxu0 0.0
        %1724 = vmatpush1.msra.mxu0 0.0
        %1725 = vmatprep.subr.mxu0 0.0
        %1726 = vmatpush1.msra.mxu0 0.0
        %1727 = vmatprep.subr.mxu0 0.0
        %1728 = vmatpush1.msra.mxu0 0.0
        %1729 = vmatprep.mubr.f32.mxu0 0.0
        %1730 = vmatmul.mubr.f32.gmra.mrb[0].mxu0 %v1663
        %v1731 = vpop.f32.mrb[0].mxu0
        %v1732 = vadd.f32 0.0, %v1731
        %v1733 = vpop.f32.mrb[0].mxu0
        %v1734 = vadd.f32 0.0, %v1733
        %1735 = vdwg.mxu0
        %v1736 = vadd.f32 %v1650, %v1732
        %v1737 = vadd.f32 %v1651, %v1734
        %1738 = vrot.lane.b32.xlu0 %v1137, 112
        %v1739 = vpop.permute.xlu0 %1738
        %1740 = vrot.lane.b32.xlu0 %v1138, 112
        %v1741 = vpop.permute.xlu0 %1740
        %v1742 = vsel %vm941, %v1739, %v1741
        %v1743 = vsel %vm941, %v1741, %v1739
        %v1744 = vmul.f32 %v1742, %v950
        %v1745 = vmul.f32 %v1743, %v954
        %s1746 = scalar_lea.vmem %s3, 56
        %v1747 = vld [vmem:[%s1746] sm:$0xff]
        %v1749 = vsel %vm282, %v1747, 0
        %1751 = vmatprep.subr.mxu0 %v1745
        %1752 = vmatpush1.msra.mxu0 %v1744
        %1753 = vmatprep.subr.mxu0 0.0
        %1754 = vmatpush1.msra.mxu0 0.0
        %1755 = vmatprep.subr.mxu0 0.0
        %1756 = vmatpush1.msra.mxu0 0.0
        %1757 = vmatprep.subr.mxu0 0.0
        %1758 = vmatpush1.msra.mxu0 0.0
        %1759 = vmatprep.subr.mxu0 0.0
        %1760 = vmatpush1.msra.mxu0 0.0
        %1761 = vmatprep.subr.mxu0 0.0
        %1762 = vmatpush1.msra.mxu0 0.0
        %1763 = vmatprep.subr.mxu0 0.0
        %1764 = vmatpush1.msra.mxu0 0.0
        %1765 = vmatprep.subr.mxu0 0.0
        %1766 = vmatpush1.msra.mxu0 0.0
        %1767 = vmatprep.subr.mxu0 0.0
        %1768 = vmatpush1.msra.mxu0 0.0
        %1769 = vmatprep.subr.mxu0 0.0
        %1770 = vmatpush1.msra.mxu0 0.0
        %1771 = vmatprep.subr.mxu0 0.0
        %1772 = vmatpush1.msra.mxu0 0.0
        %1773 = vmatprep.subr.mxu0 0.0
        %1774 = vmatpush1.msra.mxu0 0.0
        %1775 = vmatprep.subr.mxu0 0.0
        %1776 = vmatpush1.msra.mxu0 0.0
        %1777 = vmatprep.subr.mxu0 0.0
        %1778 = vmatpush1.msra.mxu0 0.0
        %1779 = vmatprep.subr.mxu0 0.0
        %1780 = vmatpush1.msra.mxu0 0.0
        %1781 = vmatprep.subr.mxu0 0.0
        %1782 = vmatpush1.msra.mxu0 0.0
        %1783 = vmatprep.subr.mxu0 0.0
        %1784 = vmatpush1.msra.mxu0 0.0
        %1785 = vmatprep.subr.mxu0 0.0
        %1786 = vmatpush1.msra.mxu0 0.0
        %1787 = vmatprep.subr.mxu0 0.0
        %1788 = vmatpush1.msra.mxu0 0.0
        %1789 = vmatprep.subr.mxu0 0.0
        %1790 = vmatpush1.msra.mxu0 0.0
        %1791 = vmatprep.subr.mxu0 0.0
        %1792 = vmatpush1.msra.mxu0 0.0
        %1793 = vmatprep.subr.mxu0 0.0
        %1794 = vmatpush1.msra.mxu0 0.0
        %1795 = vmatprep.subr.mxu0 0.0
        %1796 = vmatpush1.msra.mxu0 0.0
        %1797 = vmatprep.subr.mxu0 0.0
        %1798 = vmatpush1.msra.mxu0 0.0
        %1799 = vmatprep.subr.mxu0 0.0
        %1800 = vmatpush1.msra.mxu0 0.0
        %1801 = vmatprep.subr.mxu0 0.0
        %1802 = vmatpush1.msra.mxu0 0.0
        %1803 = vmatprep.subr.mxu0 0.0
        %1804 = vmatpush1.msra.mxu0 0.0
        %1805 = vmatprep.subr.mxu0 0.0
        %1806 = vmatpush1.msra.mxu0 0.0
        %1807 = vmatprep.subr.mxu0 0.0
        %1808 = vmatpush1.msra.mxu0 0.0
        %1809 = vmatprep.subr.mxu0 0.0
        %1810 = vmatpush1.msra.mxu0 0.0
        %1811 = vmatprep.subr.mxu0 0.0
        %1812 = vmatpush1.msra.mxu0 0.0
        %1813 = vmatprep.subr.mxu0 0.0
        %1814 = vmatpush1.msra.mxu0 0.0
        %1815 = vmatprep.mubr.f32.mxu0 0.0
        %1816 = vmatmul.mubr.f32.gmra.mrb[0].mxu0 %v1749
        %v1817 = vpop.f32.mrb[0].mxu0
        %v1818 = vadd.f32 0.0, %v1817
        %v1819 = vpop.f32.mrb[0].mxu0
        %v1820 = vadd.f32 0.0, %v1819
        %1821 = vdwg.mxu0
        %v1822 = vadd.f32 %v1736, %v1818
        %v1823 = vadd.f32 %v1737, %v1820
        %1824 = vrot.lane.b32.xlu0 %v1137, 111
        %v1825 = vpop.permute.xlu0 %1824
        %1826 = vrot.lane.b32.xlu0 %v1138, 111
        %v1827 = vpop.permute.xlu0 %1826
        %v1828 = vsel %vm1041, %v1825, %v1827
        %v1829 = vsel %vm1041, %v1827, %v1825
        %v1830 = vmul.f32 %v1828, %v1050
        %v1831 = vmul.f32 %v1829, %v1054
        %s1832 = scalar_lea.vmem %s3, 64
        %v1833 = vld [vmem:[%s1832] sm:$0xff]
        %v1835 = vsel %vm282, %v1833, 0
        %1837 = vmatprep.subr.mxu0 %v1831
        %1838 = vmatpush1.msra.mxu0 %v1830
        %1839 = vmatprep.subr.mxu0 0.0
        %1840 = vmatpush1.msra.mxu0 0.0
        %1841 = vmatprep.subr.mxu0 0.0
        %1842 = vmatpush1.msra.mxu0 0.0
        %1843 = vmatprep.subr.mxu0 0.0
        %1844 = vmatpush1.msra.mxu0 0.0
        %1845 = vmatprep.subr.mxu0 0.0
        %1846 = vmatpush1.msra.mxu0 0.0
        %1847 = vmatprep.subr.mxu0 0.0
        %1848 = vmatpush1.msra.mxu0 0.0
        %1849 = vmatprep.subr.mxu0 0.0
        %1850 = vmatpush1.msra.mxu0 0.0
        %1851 = vmatprep.subr.mxu0 0.0
        %1852 = vmatpush1.msra.mxu0 0.0
        %1853 = vmatprep.subr.mxu0 0.0
        %1854 = vmatpush1.msra.mxu0 0.0
        %1855 = vmatprep.subr.mxu0 0.0
        %1856 = vmatpush1.msra.mxu0 0.0
        %1857 = vmatprep.subr.mxu0 0.0
        %1858 = vmatpush1.msra.mxu0 0.0
        %1859 = vmatprep.subr.mxu0 0.0
        %1860 = vmatpush1.msra.mxu0 0.0
        %1861 = vmatprep.subr.mxu0 0.0
        %1862 = vmatpush1.msra.mxu0 0.0
        %1863 = vmatprep.subr.mxu0 0.0
        %1864 = vmatpush1.msra.mxu0 0.0
        %1865 = vmatprep.subr.mxu0 0.0
        %1866 = vmatpush1.msra.mxu0 0.0
        %1867 = vmatprep.subr.mxu0 0.0
        %1868 = vmatpush1.msra.mxu0 0.0
        %1869 = vmatprep.subr.mxu0 0.0
        %1870 = vmatpush1.msra.mxu0 0.0
        %1871 = vmatprep.subr.mxu0 0.0
        %1872 = vmatpush1.msra.mxu0 0.0
        %1873 = vmatprep.subr.mxu0 0.0
        %1874 = vmatpush1.msra.mxu0 0.0
        %1875 = vmatprep.subr.mxu0 0.0
        %1876 = vmatpush1.msra.mxu0 0.0
        %1877 = vmatprep.subr.mxu0 0.0
        %1878 = vmatpush1.msra.mxu0 0.0
        %1879 = vmatprep.subr.mxu0 0.0
        %1880 = vmatpush1.msra.mxu0 0.0
        %1881 = vmatprep.subr.mxu0 0.0
        %1882 = vmatpush1.msra.mxu0 0.0
        %1883 = vmatprep.subr.mxu0 0.0
        %1884 = vmatpush1.msra.mxu0 0.0
        %1885 = vmatprep.subr.mxu0 0.0
        %1886 = vmatpush1.msra.mxu0 0.0
        %1887 = vmatprep.subr.mxu0 0.0
        %1888 = vmatpush1.msra.mxu0 0.0
        %1889 = vmatprep.subr.mxu0 0.0
        %1890 = vmatpush1.msra.mxu0 0.0
        %1891 = vmatprep.subr.mxu0 0.0
        %1892 = vmatpush1.msra.mxu0 0.0
        %1893 = vmatprep.subr.mxu0 0.0
        %1894 = vmatpush1.msra.mxu0 0.0
        %1895 = vmatprep.subr.mxu0 0.0
        %1896 = vmatpush1.msra.mxu0 0.0
        %1897 = vmatprep.subr.mxu0 0.0
        %1898 = vmatpush1.msra.mxu0 0.0
        %1899 = vmatprep.subr.mxu0 0.0
        %1900 = vmatpush1.msra.mxu0 0.0
        %1901 = vmatprep.mubr.f32.mxu0 0.0
        %1902 = vmatmul.mubr.f32.gmra.mrb[0].mxu0 %v1835
        %v1903 = vpop.f32.mrb[0].mxu0
        %v1904 = vadd.f32 0.0, %v1903
        %v1905 = vpop.f32.mrb[0].mxu0
        %v1906 = vadd.f32 0.0, %v1905
        %1907 = vdwg.mxu0
        %v1908 = vadd.f32 %v1822, %v1904
        %v1909 = vadd.f32 %v1823, %v1906
        %v1910 = vmax.f32 %v1908, 0.0
        %v1911 = vmax.f32 %v1909, 0.0
        %1912 = vst [vmem:[%s244] sm:$0xff] %v1910
        %1913 = vst [vmem:[%s244 + $0x8] sm:$0xff] %v1911
        %s1914 = sand.u32 %s159, 1
        %s1915 = scalar_lea.sflag [#allocation3], %s1914
        %s1916 = sand.u32 %s159, 1
        %s1917 = smul.addr %s1916, 16
        %s1918 = scalar_lea.vmem [#allocation2], %s1917
        // Predicated region
        $region45: #{tpu_custom_call.1} parent=43 // pred_check
          %p1919 = pneg %p169
        $region46: #{tpu_custom_call.1} parent=43 // pred_check_branch
          %1921 = sbr.rel (%p1919) target = $region48
        $region47: #{tpu_custom_call.1} parent=43 // pred_region
          %s1923 = ssub.s32 256, 256
          %1924 = vsyncadd %s1915, %s1923
          %s1925 = smul.addr %s20, 2
          %s1926 = smul.addr %s1925, 128
          %s1927 = scalar_lea.hbm %s6, %s1926
          %s1929 = sshll.u32 %s1918, 4
          %s1930 = int_to_ptr.vmem [resolvable:$true] %s1929
          %1932 = dma.vmem_to_hbm [thread:$0]  %s1930, 256, %s1927, %s1915
        $region48: #{tpu_custom_call.1} parent=43 // pred_fallthru
          _
      $region44: #{tpu_custom_call.1} parent=5 // pred_fallthru
        _
      %p1933 = scmp.le.s32.totalorder 2, %s15
      // Predicated region
      $region49: #{tpu_custom_call.1} parent=5 // pred_check
        %p1934 = pneg %p1933
      $region50: #{tpu_custom_call.1} parent=5 // pred_check_branch
        %1936 = sbr.rel (%p1934) target = $region52
      $region51: #{tpu_custom_call.1} parent=5 // pred_region
        %s1937 = ssub.s32 %s15, 2
        // Predicated region
        $region53: #{tpu_custom_call.1} parent=51 // pred_check
          %p1938 = pneg %p175
        $region54: #{tpu_custom_call.1} parent=51 // pred_check_branch
          %1940 = sbr.rel (%p1938) target = $region56
        $region55: #{tpu_custom_call.1} parent=51 // pred_region
          %s1941 = sand.u32 %s160, 1
          %s1942 = scalar_lea.sflag [#allocation3], %s1941
          %s1943 = sand.u32 %s160, 1
          %s1944 = smul.addr %s1943, 16
          %s1945 = scalar_lea.vmem [#allocation2], %s1944
          %1946 = dma.done %s1942, 256
        $region56: #{tpu_custom_call.1} parent=51 // pred_fallthru
          _
      $region52: #{tpu_custom_call.1} parent=5 // pred_fallthru
        _
    $region6: #{tpu_custom_call.1} parent=1 // loop_footer
      %s19 = sadd.s32 1, %s15
    $region7: #{tpu_custom_call.1} parent=1 // loop_footer_branch
      %14 = sbr.rel target = $region3
    $region8: #{tpu_custom_call.1} parent=1 // loop_exit
      _
    %1947 = vsyncpa [#allocation3], 1
    %s1948 = scalar_lea.sflag [#allocation3], 1
    %1949 = vsyncpa %s1948, 1

</llo_original>
